<compile_context>
chip_gen: v5e
topology: v5e:2x2
jax: 0.10.0
libtpu: 0.0.40
codegen_flags: <defaults>
</compile_context>

<pallas_src>
import functools

import numpy as np
import jax
import jax.numpy as jnp
from jax.experimental import pallas as pl
from jax.experimental.pallas import tpu as pltpu


def _round_up(v, m):
    return (v + m - 1) // m * m


# ---------------------------------------------------------------------------
# Fused kernel: full layer stack + mix + Frobenius renorm for ONE batch element.
#   x_ref     : [c_pad, H*W]   channel-padded input (rows >= nc are zero), f32
#   alpha_ref : [1, 1]         per-batch mix coefficient, f32
#   mask_ref  : [9, H*W]       halo-validity masks for the k=3 taps, f32
#   args      : ker_0, shift_0, ..., ker_{L-1}, shift_{L-1}, out_ref
#       ker_l   : [c_pad, k_l*k_l*c_pad]  bf16 (zero-padded channels)
#       shift_l : [c_pad, 1]              f32  (zero-padded channels)
#       out_ref : [c_out, H*W]            f32
# ---------------------------------------------------------------------------
def _fused_gin_kernel(x_ref, alpha_ref, mask_ref, *args,
                      W, c_out, layer_ks, layer_acts):
    out_ref = args[-1]
    wrefs = args[:-1]

    x_in = x_ref[...]                      # [c_pad, HW] f32, lane-dense
    act = x_in

    # Hoist the 9 halo masks once (shared by every k=3 layer).
    if any(k == 3 for k in layer_ks):
        masks = [mask_ref[i:i + 1, :] for i in range(9)]

    for l in range(len(layer_ks)):
        k = layer_ks[l]
        use_act = layer_acts[l]
        ker = wrefs[2 * l][...]            # [c_pad, k*k*c_pad] bf16
        shift = wrefs[2 * l + 1][...]      # [c_pad, 1] f32

        if k == 1:
            patch = act                    # K = c_pad
        else:                              # k == 3, padding = 1 (zero pad)
            r = k // 2
            rows = []
            for dy in range(k):
                for dx in range(k):
                    s = (dy - r) * W + (dx - r)        # flat read offset
                    shifted = act if s == 0 else jnp.roll(act, -s, axis=1)
                    rows.append(shifted * masks[dy * k + dx])
            patch = jnp.concatenate(rows, axis=0)      # [k*k*c_pad, HW]

        # One weight-stationary MXU matmul per layer: [c_pad,K] x [K,HW].
        z = jnp.dot(ker, patch.astype(jnp.bfloat16),
                    preferred_element_type=jnp.float32)   # [c_pad, HW] f32
        z = z + shift                                      # lane broadcast
        if use_act:
            z = jnp.where(z >= 0.0, z, 0.01 * z)           # F.leaky_relu
        act = z

    # Mix with the original input and Frobenius-renormalize (per batch).
    a = alpha_ref[...]                                     # (1, 1)
    mixed = a * act + (1.0 - a) * x_in                     # padded rows stay 0
    in_frob = jnp.sqrt(jnp.sum(x_in * x_in, keepdims=True))      # (1, 1)
    self_frob = jnp.sqrt(jnp.sum(mixed * mixed, keepdims=True))  # (1, 1)
    scale = in_frob * pl.reciprocal(self_frob + 1e-5, approx=True)
    out_ref[...] = (mixed[:c_out, :] * scale).astype(out_ref.dtype)


def _gin_fused_call(x_pad, alphas3, mask, weights, *,
                    W, c_out, layer_ks, layer_acts):
    nb, c_pad, HW = x_pad.shape
    kernel = functools.partial(
        _fused_gin_kernel, W=W, c_out=c_out,
        layer_ks=tuple(layer_ks), layer_acts=tuple(layer_acts))

    in_specs = [
        pl.BlockSpec((None, c_pad, HW), lambda b: (b, 0, 0)),   # x (per batch)
        pl.BlockSpec((None, 1, 1), lambda b: (b, 0, 0)),        # alpha
        pl.BlockSpec((9, HW), lambda b: (0, 0)),                # shared masks
    ]
    for w in weights:                                           # ker / shift
        in_specs.append(pl.BlockSpec((None,) + w.shape[1:],
                                     lambda b: (b, 0, 0)))

    return pl.pallas_call(
        kernel,
        out_shape=jax.ShapeDtypeStruct((nb, c_out, HW), jnp.float32),
        grid=(nb,),
        in_specs=in_specs,
        out_specs=pl.BlockSpec((None, c_out, HW), lambda b: (b, 0, 0)),
        compiler_params=pltpu.CompilerParams(
            dimension_semantics=("parallel",)),
    )(x_pad, alphas3, mask, *weights)


# ---------------------------------------------------------------------------
# Full GINGroupConv forward (random parameter generation in plain JAX/NumPy,
# the whole hot path in one Pallas kernel).
# ---------------------------------------------------------------------------
def gin_group_conv(x_nchw, cfg, seed=0):
    nb, nc, H, W = x_nchw.shape
    n_layer = cfg["N_LAYER"]
    in_ch = cfg["IN_CHANNELS"]
    interm = cfg["INTERM_CHANNELS"]
    assert nc == in_ch, "module requires nc == IN_CHANNELS"
    scale_pool = (1, 3)
    HW = H * W

    # (cin, cout, use_act) per GradlessGCReplayNonlinBlock.
    layer_chans = ([(in_ch, interm, True)]
                   + [(interm, interm, True)] * (n_layer - 2)
                   + [(interm, in_ch, False)])
    layer_acts = [act for (_, _, act) in layer_chans]

    # Per-layer random kernel size, drawn host-side (k must be static since the
    # fused kernel is specialized on it); avoids a traced->host sync under jit.
    host_rng = np.random.default_rng(seed)
    layer_ks = [int(scale_pool[int(host_rng.integers(len(scale_pool)))])
                for _ in layer_chans]

    key = jax.random.PRNGKey(seed)
    key, ka = jax.random.split(key)
    alphas = jax.random.uniform(ka, (nb,), jnp.float32)      # torch.rand(nb)

    # Pad channels to a sublane multiple so every in-kernel tensor is a tile
    # aligned, lane-dense [c_pad, H*W]; padded channels carry zeros everywhere.
    c_pad = _round_up(max(in_ch, interm), 8)

    weights = []
    for (cin, cout, _), k in zip(layer_chans, layer_ks):
        key, kw, ks = jax.random.split(key, 3)
        ker = jax.random.normal(kw, (nb, cout, cin, k, k), jnp.float32)
        shift = jax.random.normal(ks, (nb, cout), jnp.float32)
        # [nb,cout,cin,k,k] -> [nb,cout,k,k,cin], embed in zero-padded
        # [nb,c_pad,k,k,c_pad], flatten so column index = (dy*k+dx)*c_pad + cin.
        ker_r = jnp.transpose(ker, (0, 1, 3, 4, 2))
        ker_p = jnp.zeros((nb, c_pad, k, k, c_pad), jnp.float32)
        ker_p = ker_p.at[:, :cout, :, :, :cin].set(ker_r)
        ker_mat = ker_p.reshape(nb, c_pad, k * k * c_pad).astype(jnp.bfloat16)
        shift_p = jnp.zeros((nb, c_pad, 1), jnp.float32)
        shift_p = shift_p.at[:, :cout, 0].set(shift)
        weights += [ker_mat, shift_p]

    # Channel-padded, lane-dense input: [nb, c_pad, H*W] (NCHW flatten, no transpose).
    x_flat = x_nchw.reshape(nb, nc, HW).astype(jnp.float32)
    x_pad = jnp.zeros((nb, c_pad, HW), jnp.float32).at[:, :nc, :].set(x_flat)

    # Halo-validity masks (zero padding) for the k=3 taps, one row per (dy,dx).
    yy, xx = np.meshgrid(np.arange(H), np.arange(W), indexing="ij")
    yy = yy.reshape(-1)
    xx = xx.reshape(-1)
    mask_np = np.zeros((9, HW), np.float32)
    for dy in range(3):
        for dx in range(3):
            sy, sx = dy - 1, dx - 1
            ok = ((yy + sy >= 0) & (yy + sy < H)
                  & (xx + sx >= 0) & (xx + sx < W))
            mask_np[dy * 3 + dx] = ok.astype(np.float32)
    mask = jnp.asarray(mask_np)

    out_flat = _gin_fused_call(
        x_pad, alphas.reshape(nb, 1, 1), mask, weights,
        W=W, c_out=in_ch, layer_ks=layer_ks, layer_acts=layer_acts)
    return out_flat.reshape(nb, in_ch, H, W)


if __name__ == "__main__":
    cfg = {"N_LAYER": 4, "IN_CHANNELS": 4, "INTERM_CHANNELS": 8}
    key = jax.random.PRNGKey(0)
    kx, _ = jax.random.split(key)
    x = jax.random.normal(kx, (2, 4, 16, 16), jnp.float32)   # NCHW, like PyTorch

    out = gin_group_conv(x, cfg, seed=0)
    out = jax.block_until_ready(out)

    assert out.shape == x.shape, out.shape
    assert out.dtype == jnp.float32
    assert bool(jnp.all(jnp.isfinite(out)))
    print("KERNEL_OK")
</pallas_src>

<mosaic_0001>
module attributes {stable_mosaic.version = 11 : i64} {
  func.func @_fused_gin_kernel(%arg0: i32, %arg1: memref<1x8x256xf32, #tpu.memory_space<vmem>>, %arg2: memref<1x1x1xf32, #tpu.memory_space<vmem>>, %arg3: memref<9x256xf32, #tpu.memory_space<vmem>>, %arg4: memref<1x8x72xbf16, #tpu.memory_space<vmem>>, %arg5: memref<1x8x1xf32, #tpu.memory_space<vmem>>, %arg6: memref<1x8x72xbf16, #tpu.memory_space<vmem>>, %arg7: memref<1x8x1xf32, #tpu.memory_space<vmem>>, %arg8: memref<1x8x72xbf16, #tpu.memory_space<vmem>>, %arg9: memref<1x8x1xf32, #tpu.memory_space<vmem>>, %arg10: memref<1x8x8xbf16, #tpu.memory_space<vmem>>, %arg11: memref<1x8x1xf32, #tpu.memory_space<vmem>>, %arg12: memref<1x4x256xf32, #tpu.memory_space<vmem>>) attributes {dimension_semantics = [#tpu.dimension_semantics<parallel>], iteration_bounds = array<i64: 2>, scalar_prefetch = 0 : i64, scratch_operands = 0 : i64, tpu.core_type = #tpu.core_type<tc>, window_params = [{transform_indices = @transform_0, window_bounds = array<i64: 1, 8, 256>}, {transform_indices = @transform_1, window_bounds = array<i64: 1, 1, 1>}, {pipeline_mode = #tpu.pipeline_mode<synchronous>, transform_indices = @transform_2, window_bounds = array<i64: 9, 256>}, {transform_indices = @transform_3, window_bounds = array<i64: 1, 8, 72>}, {transform_indices = @transform_4, window_bounds = array<i64: 1, 8, 1>}, {transform_indices = @transform_5, window_bounds = array<i64: 1, 8, 72>}, {transform_indices = @transform_6, window_bounds = array<i64: 1, 8, 1>}, {transform_indices = @transform_7, window_bounds = array<i64: 1, 8, 72>}, {transform_indices = @transform_8, window_bounds = array<i64: 1, 8, 1>}, {transform_indices = @transform_9, window_bounds = array<i64: 1, 8, 8>}, {transform_indices = @transform_10, window_bounds = array<i64: 1, 8, 1>}, {transform_indices = @transform_11, window_bounds = array<i64: 1, 4, 256>}]} {
    %c0 = arith.constant 0 : index
    %c0_0 = arith.constant 0 : index
    %c0_1 = arith.constant 0 : index
    %0 = vector.load %arg1[%c0, %c0_0, %c0_1] : memref<1x8x256xf32, #tpu.memory_space<vmem>>, vector<1x8x256xf32>
    %1 = vector.shape_cast %0 : vector<1x8x256xf32> to vector<8x256xf32>
    %c0_2 = arith.constant 0 : index
    %c0_3 = arith.constant 0 : index
    %2 = vector.load %arg3[%c0_2, %c0_3] : memref<9x256xf32, #tpu.memory_space<vmem>>, vector<1x256xf32>
    %c1 = arith.constant 1 : index
    %c0_4 = arith.constant 0 : index
    %3 = vector.load %arg3[%c1, %c0_4] : memref<9x256xf32, #tpu.memory_space<vmem>>, vector<1x256xf32>
    %c2 = arith.constant 2 : index
    %c0_5 = arith.constant 0 : index
    %4 = vector.load %arg3[%c2, %c0_5] : memref<9x256xf32, #tpu.memory_space<vmem>>, vector<1x256xf32>
    %c3 = arith.constant 3 : index
    %c0_6 = arith.constant 0 : index
    %5 = vector.load %arg3[%c3, %c0_6] : memref<9x256xf32, #tpu.memory_space<vmem>>, vector<1x256xf32>
    %c4 = arith.constant 4 : index
    %c0_7 = arith.constant 0 : index
    %6 = vector.load %arg3[%c4, %c0_7] : memref<9x256xf32, #tpu.memory_space<vmem>>, vector<1x256xf32>
    %c5 = arith.constant 5 : index
    %c0_8 = arith.constant 0 : index
    %7 = vector.load %arg3[%c5, %c0_8] : memref<9x256xf32, #tpu.memory_space<vmem>>, vector<1x256xf32>
    %c6 = arith.constant 6 : index
    %c0_9 = arith.constant 0 : index
    %8 = vector.load %arg3[%c6, %c0_9] : memref<9x256xf32, #tpu.memory_space<vmem>>, vector<1x256xf32>
    %c7 = arith.constant 7 : index
    %c0_10 = arith.constant 0 : index
    %9 = vector.load %arg3[%c7, %c0_10] : memref<9x256xf32, #tpu.memory_space<vmem>>, vector<1x256xf32>
    %c8 = arith.constant 8 : index
    %c0_11 = arith.constant 0 : index
    %10 = vector.load %arg3[%c8, %c0_11] : memref<9x256xf32, #tpu.memory_space<vmem>>, vector<1x256xf32>
    %c0_12 = arith.constant 0 : index
    %c0_13 = arith.constant 0 : index
    %c0_14 = arith.constant 0 : index
    %11 = vector.load %arg4[%c0_12, %c0_13, %c0_14] : memref<1x8x72xbf16, #tpu.memory_space<vmem>>, vector<1x8x72xbf16>
    %12 = vector.shape_cast %11 : vector<1x8x72xbf16> to vector<8x72xbf16>
    %c0_15 = arith.constant 0 : index
    %c0_16 = arith.constant 0 : index
    %c0_17 = arith.constant 0 : index
    %13 = vector.load %arg5[%c0_15, %c0_16, %c0_17] : memref<1x8x1xf32, #tpu.memory_space<vmem>>, vector<1x8x1xf32>
    %14 = vector.shape_cast %13 : vector<1x8x1xf32> to vector<8x1xf32>
    %15 = vector.extract_strided_slice %1 {offsets = [0, 239], sizes = [8, 17], strides = [1, 1]} : vector<8x256xf32> to vector<8x17xf32>
    %16 = vector.extract_strided_slice %1 {offsets = [0, 0], sizes = [8, 239], strides = [1, 1]} : vector<8x256xf32> to vector<8x239xf32>
    %17 = tpu.concatenate %15, %16 in 1 : vector<8x17xf32>, vector<8x239xf32> -> vector<8x256xf32>
    %18 = vector.broadcast %2 : vector<1x256xf32> to vector<8x256xf32>
    %19 = arith.mulf %17, %18 : vector<8x256xf32>
    %20 = vector.extract_strided_slice %1 {offsets = [0, 240], sizes = [8, 16], strides = [1, 1]} : vector<8x256xf32> to vector<8x16xf32>
    %21 = vector.extract_strided_slice %1 {offsets = [0, 0], sizes = [8, 240], strides = [1, 1]} : vector<8x256xf32> to vector<8x240xf32>
    %22 = tpu.concatenate %20, %21 in 1 : vector<8x16xf32>, vector<8x240xf32> -> vector<8x256xf32>
    %23 = vector.broadcast %3 : vector<1x256xf32> to vector<8x256xf32>
    %24 = arith.mulf %22, %23 : vector<8x256xf32>
    %25 = vector.extract_strided_slice %1 {offsets = [0, 241], sizes = [8, 15], strides = [1, 1]} : vector<8x256xf32> to vector<8x15xf32>
    %26 = vector.extract_strided_slice %1 {offsets = [0, 0], sizes = [8, 241], strides = [1, 1]} : vector<8x256xf32> to vector<8x241xf32>
    %27 = tpu.concatenate %25, %26 in 1 : vector<8x15xf32>, vector<8x241xf32> -> vector<8x256xf32>
    %28 = vector.broadcast %4 : vector<1x256xf32> to vector<8x256xf32>
    %29 = arith.mulf %27, %28 : vector<8x256xf32>
    %30 = vector.extract_strided_slice %1 {offsets = [0, 255], sizes = [8, 1], strides = [1, 1]} : vector<8x256xf32> to vector<8x1xf32>
    %31 = vector.extract_strided_slice %1 {offsets = [0, 0], sizes = [8, 255], strides = [1, 1]} : vector<8x256xf32> to vector<8x255xf32>
    %32 = tpu.concatenate %30, %31 in 1 : vector<8x1xf32>, vector<8x255xf32> -> vector<8x256xf32>
    %33 = vector.broadcast %5 : vector<1x256xf32> to vector<8x256xf32>
    %34 = arith.mulf %32, %33 : vector<8x256xf32>
    %35 = vector.broadcast %6 : vector<1x256xf32> to vector<8x256xf32>
    %36 = arith.mulf %1, %35 : vector<8x256xf32>
    %37 = vector.extract_strided_slice %1 {offsets = [0, 1], sizes = [8, 255], strides = [1, 1]} : vector<8x256xf32> to vector<8x255xf32>
    %38 = vector.extract_strided_slice %1 {offsets = [0, 0], sizes = [8, 1], strides = [1, 1]} : vector<8x256xf32> to vector<8x1xf32>
    %39 = tpu.concatenate %37, %38 in 1 : vector<8x255xf32>, vector<8x1xf32> -> vector<8x256xf32>
    %40 = vector.broadcast %7 : vector<1x256xf32> to vector<8x256xf32>
    %41 = arith.mulf %39, %40 : vector<8x256xf32>
    %42 = vector.extract_strided_slice %1 {offsets = [0, 15], sizes = [8, 241], strides = [1, 1]} : vector<8x256xf32> to vector<8x241xf32>
    %43 = vector.extract_strided_slice %1 {offsets = [0, 0], sizes = [8, 15], strides = [1, 1]} : vector<8x256xf32> to vector<8x15xf32>
    %44 = tpu.concatenate %42, %43 in 1 : vector<8x241xf32>, vector<8x15xf32> -> vector<8x256xf32>
    %45 = vector.broadcast %8 : vector<1x256xf32> to vector<8x256xf32>
    %46 = arith.mulf %44, %45 : vector<8x256xf32>
    %47 = vector.extract_strided_slice %1 {offsets = [0, 16], sizes = [8, 240], strides = [1, 1]} : vector<8x256xf32> to vector<8x240xf32>
    %48 = vector.extract_strided_slice %1 {offsets = [0, 0], sizes = [8, 16], strides = [1, 1]} : vector<8x256xf32> to vector<8x16xf32>
    %49 = tpu.concatenate %47, %48 in 1 : vector<8x240xf32>, vector<8x16xf32> -> vector<8x256xf32>
    %50 = vector.broadcast %9 : vector<1x256xf32> to vector<8x256xf32>
    %51 = arith.mulf %49, %50 : vector<8x256xf32>
    %52 = vector.extract_strided_slice %1 {offsets = [0, 17], sizes = [8, 239], strides = [1, 1]} : vector<8x256xf32> to vector<8x239xf32>
    %53 = vector.extract_strided_slice %1 {offsets = [0, 0], sizes = [8, 17], strides = [1, 1]} : vector<8x256xf32> to vector<8x17xf32>
    %54 = tpu.concatenate %52, %53 in 1 : vector<8x239xf32>, vector<8x17xf32> -> vector<8x256xf32>
    %55 = vector.broadcast %10 : vector<1x256xf32> to vector<8x256xf32>
    %56 = arith.mulf %54, %55 : vector<8x256xf32>
    %57 = tpu.concatenate %19, %24, %29, %34, %36, %41, %46, %51, %56 in 0 : vector<8x256xf32>, vector<8x256xf32>, vector<8x256xf32>, vector<8x256xf32>, vector<8x256xf32>, vector<8x256xf32>, vector<8x256xf32>, vector<8x256xf32>, vector<8x256xf32> -> vector<72x256xf32>
    %58 = arith.truncf %57 : vector<72x256xf32> to vector<72x256xbf16>
    %cst = arith.constant dense<0.000000e+00> : vector<8x256xf32>
    %59 = tpu.matmul %12, %58, %cst {dimension_numbers = #tpu.dot_dimension_numbers<[1], [0], [0], [1], [0, 0, 1, 1], [], []>} : vector<8x72xbf16>, vector<72x256xbf16>, vector<8x256xf32> -> vector<8x256xf32>
    %60 = vector.broadcast %14 : vector<8x1xf32> to vector<8x256xf32>
    %61 = arith.addf %59, %60 : vector<8x256xf32>
    %cst_18 = arith.constant 0.000000e+00 : f32
    %62 = vector.broadcast %cst_18 : f32 to vector<8x256xf32>
    %63 = arith.cmpf oge, %61, %62 : vector<8x256xf32>
    %cst_19 = arith.constant 0.00999999977 : f32
    %64 = vector.broadcast %cst_19 : f32 to vector<8x256xf32>
    %65 = arith.mulf %64, %61 : vector<8x256xf32>
    %66 = arith.select %63, %61, %65 : vector<8x256xi1>, vector<8x256xf32>
    %c0_20 = arith.constant 0 : index
    %c0_21 = arith.constant 0 : index
    %c0_22 = arith.constant 0 : index
    %67 = vector.load %arg6[%c0_20, %c0_21, %c0_22] : memref<1x8x72xbf16, #tpu.memory_space<vmem>>, vector<1x8x72xbf16>
    %68 = vector.shape_cast %67 : vector<1x8x72xbf16> to vector<8x72xbf16>
    %c0_23 = arith.constant 0 : index
    %c0_24 = arith.constant 0 : index
    %c0_25 = arith.constant 0 : index
    %69 = vector.load %arg7[%c0_23, %c0_24, %c0_25] : memref<1x8x1xf32, #tpu.memory_space<vmem>>, vector<1x8x1xf32>
    %70 = vector.shape_cast %69 : vector<1x8x1xf32> to vector<8x1xf32>
    %71 = vector.extract_strided_slice %66 {offsets = [0, 239], sizes = [8, 17], strides = [1, 1]} : vector<8x256xf32> to vector<8x17xf32>
    %72 = vector.extract_strided_slice %66 {offsets = [0, 0], sizes = [8, 239], strides = [1, 1]} : vector<8x256xf32> to vector<8x239xf32>
    %73 = tpu.concatenate %71, %72 in 1 : vector<8x17xf32>, vector<8x239xf32> -> vector<8x256xf32>
    %74 = vector.broadcast %2 : vector<1x256xf32> to vector<8x256xf32>
    %75 = arith.mulf %73, %74 : vector<8x256xf32>
    %76 = vector.extract_strided_slice %66 {offsets = [0, 240], sizes = [8, 16], strides = [1, 1]} : vector<8x256xf32> to vector<8x16xf32>
    %77 = vector.extract_strided_slice %66 {offsets = [0, 0], sizes = [8, 240], strides = [1, 1]} : vector<8x256xf32> to vector<8x240xf32>
    %78 = tpu.concatenate %76, %77 in 1 : vector<8x16xf32>, vector<8x240xf32> -> vector<8x256xf32>
    %79 = vector.broadcast %3 : vector<1x256xf32> to vector<8x256xf32>
    %80 = arith.mulf %78, %79 : vector<8x256xf32>
    %81 = vector.extract_strided_slice %66 {offsets = [0, 241], sizes = [8, 15], strides = [1, 1]} : vector<8x256xf32> to vector<8x15xf32>
    %82 = vector.extract_strided_slice %66 {offsets = [0, 0], sizes = [8, 241], strides = [1, 1]} : vector<8x256xf32> to vector<8x241xf32>
    %83 = tpu.concatenate %81, %82 in 1 : vector<8x15xf32>, vector<8x241xf32> -> vector<8x256xf32>
    %84 = vector.broadcast %4 : vector<1x256xf32> to vector<8x256xf32>
    %85 = arith.mulf %83, %84 : vector<8x256xf32>
    %86 = vector.extract_strided_slice %66 {offsets = [0, 255], sizes = [8, 1], strides = [1, 1]} : vector<8x256xf32> to vector<8x1xf32>
    %87 = vector.extract_strided_slice %66 {offsets = [0, 0], sizes = [8, 255], strides = [1, 1]} : vector<8x256xf32> to vector<8x255xf32>
    %88 = tpu.concatenate %86, %87 in 1 : vector<8x1xf32>, vector<8x255xf32> -> vector<8x256xf32>
    %89 = vector.broadcast %5 : vector<1x256xf32> to vector<8x256xf32>
    %90 = arith.mulf %88, %89 : vector<8x256xf32>
    %91 = vector.broadcast %6 : vector<1x256xf32> to vector<8x256xf32>
    %92 = arith.mulf %66, %91 : vector<8x256xf32>
    %93 = vector.extract_strided_slice %66 {offsets = [0, 1], sizes = [8, 255], strides = [1, 1]} : vector<8x256xf32> to vector<8x255xf32>
    %94 = vector.extract_strided_slice %66 {offsets = [0, 0], sizes = [8, 1], strides = [1, 1]} : vector<8x256xf32> to vector<8x1xf32>
    %95 = tpu.concatenate %93, %94 in 1 : vector<8x255xf32>, vector<8x1xf32> -> vector<8x256xf32>
    %96 = vector.broadcast %7 : vector<1x256xf32> to vector<8x256xf32>
    %97 = arith.mulf %95, %96 : vector<8x256xf32>
    %98 = vector.extract_strided_slice %66 {offsets = [0, 15], sizes = [8, 241], strides = [1, 1]} : vector<8x256xf32> to vector<8x241xf32>
    %99 = vector.extract_strided_slice %66 {offsets = [0, 0], sizes = [8, 15], strides = [1, 1]} : vector<8x256xf32> to vector<8x15xf32>
    %100 = tpu.concatenate %98, %99 in 1 : vector<8x241xf32>, vector<8x15xf32> -> vector<8x256xf32>
    %101 = vector.broadcast %8 : vector<1x256xf32> to vector<8x256xf32>
    %102 = arith.mulf %100, %101 : vector<8x256xf32>
    %103 = vector.extract_strided_slice %66 {offsets = [0, 16], sizes = [8, 240], strides = [1, 1]} : vector<8x256xf32> to vector<8x240xf32>
    %104 = vector.extract_strided_slice %66 {offsets = [0, 0], sizes = [8, 16], strides = [1, 1]} : vector<8x256xf32> to vector<8x16xf32>
    %105 = tpu.concatenate %103, %104 in 1 : vector<8x240xf32>, vector<8x16xf32> -> vector<8x256xf32>
    %106 = vector.broadcast %9 : vector<1x256xf32> to vector<8x256xf32>
    %107 = arith.mulf %105, %106 : vector<8x256xf32>
    %108 = vector.extract_strided_slice %66 {offsets = [0, 17], sizes = [8, 239], strides = [1, 1]} : vector<8x256xf32> to vector<8x239xf32>
    %109 = vector.extract_strided_slice %66 {offsets = [0, 0], sizes = [8, 17], strides = [1, 1]} : vector<8x256xf32> to vector<8x17xf32>
    %110 = tpu.concatenate %108, %109 in 1 : vector<8x239xf32>, vector<8x17xf32> -> vector<8x256xf32>
    %111 = vector.broadcast %10 : vector<1x256xf32> to vector<8x256xf32>
    %112 = arith.mulf %110, %111 : vector<8x256xf32>
    %113 = tpu.concatenate %75, %80, %85, %90, %92, %97, %102, %107, %112 in 0 : vector<8x256xf32>, vector<8x256xf32>, vector<8x256xf32>, vector<8x256xf32>, vector<8x256xf32>, vector<8x256xf32>, vector<8x256xf32>, vector<8x256xf32>, vector<8x256xf32> -> vector<72x256xf32>
    %114 = arith.truncf %113 : vector<72x256xf32> to vector<72x256xbf16>
    %cst_26 = arith.constant dense<0.000000e+00> : vector<8x256xf32>
    %115 = tpu.matmul %68, %114, %cst_26 {dimension_numbers = #tpu.dot_dimension_numbers<[1], [0], [0], [1], [0, 0, 1, 1], [], []>} : vector<8x72xbf16>, vector<72x256xbf16>, vector<8x256xf32> -> vector<8x256xf32>
    %116 = vector.broadcast %70 : vector<8x1xf32> to vector<8x256xf32>
    %117 = arith.addf %115, %116 : vector<8x256xf32>
    %cst_27 = arith.constant 0.000000e+00 : f32
    %118 = vector.broadcast %cst_27 : f32 to vector<8x256xf32>
    %119 = arith.cmpf oge, %117, %118 : vector<8x256xf32>
    %cst_28 = arith.constant 0.00999999977 : f32
    %120 = vector.broadcast %cst_28 : f32 to vector<8x256xf32>
    %121 = arith.mulf %120, %117 : vector<8x256xf32>
    %122 = arith.select %119, %117, %121 : vector<8x256xi1>, vector<8x256xf32>
    %c0_29 = arith.constant 0 : index
    %c0_30 = arith.constant 0 : index
    %c0_31 = arith.constant 0 : index
    %123 = vector.load %arg8[%c0_29, %c0_30, %c0_31] : memref<1x8x72xbf16, #tpu.memory_space<vmem>>, vector<1x8x72xbf16>
    %124 = vector.shape_cast %123 : vector<1x8x72xbf16> to vector<8x72xbf16>
    %c0_32 = arith.constant 0 : index
    %c0_33 = arith.constant 0 : index
    %c0_34 = arith.constant 0 : index
    %125 = vector.load %arg9[%c0_32, %c0_33, %c0_34] : memref<1x8x1xf32, #tpu.memory_space<vmem>>, vector<1x8x1xf32>
    %126 = vector.shape_cast %125 : vector<1x8x1xf32> to vector<8x1xf32>
    %127 = vector.extract_strided_slice %122 {offsets = [0, 239], sizes = [8, 17], strides = [1, 1]} : vector<8x256xf32> to vector<8x17xf32>
    %128 = vector.extract_strided_slice %122 {offsets = [0, 0], sizes = [8, 239], strides = [1, 1]} : vector<8x256xf32> to vector<8x239xf32>
    %129 = tpu.concatenate %127, %128 in 1 : vector<8x17xf32>, vector<8x239xf32> -> vector<8x256xf32>
    %130 = vector.broadcast %2 : vector<1x256xf32> to vector<8x256xf32>
    %131 = arith.mulf %129, %130 : vector<8x256xf32>
    %132 = vector.extract_strided_slice %122 {offsets = [0, 240], sizes = [8, 16], strides = [1, 1]} : vector<8x256xf32> to vector<8x16xf32>
    %133 = vector.extract_strided_slice %122 {offsets = [0, 0], sizes = [8, 240], strides = [1, 1]} : vector<8x256xf32> to vector<8x240xf32>
    %134 = tpu.concatenate %132, %133 in 1 : vector<8x16xf32>, vector<8x240xf32> -> vector<8x256xf32>
    %135 = vector.broadcast %3 : vector<1x256xf32> to vector<8x256xf32>
    %136 = arith.mulf %134, %135 : vector<8x256xf32>
    %137 = vector.extract_strided_slice %122 {offsets = [0, 241], sizes = [8, 15], strides = [1, 1]} : vector<8x256xf32> to vector<8x15xf32>
    %138 = vector.extract_strided_slice %122 {offsets = [0, 0], sizes = [8, 241], strides = [1, 1]} : vector<8x256xf32> to vector<8x241xf32>
    %139 = tpu.concatenate %137, %138 in 1 : vector<8x15xf32>, vector<8x241xf32> -> vector<8x256xf32>
    %140 = vector.broadcast %4 : vector<1x256xf32> to vector<8x256xf32>
    %141 = arith.mulf %139, %140 : vector<8x256xf32>
    %142 = vector.extract_strided_slice %122 {offsets = [0, 255], sizes = [8, 1], strides = [1, 1]} : vector<8x256xf32> to vector<8x1xf32>
    %143 = vector.extract_strided_slice %122 {offsets = [0, 0], sizes = [8, 255], strides = [1, 1]} : vector<8x256xf32> to vector<8x255xf32>
    %144 = tpu.concatenate %142, %143 in 1 : vector<8x1xf32>, vector<8x255xf32> -> vector<8x256xf32>
    %145 = vector.broadcast %5 : vector<1x256xf32> to vector<8x256xf32>
    %146 = arith.mulf %144, %145 : vector<8x256xf32>
    %147 = vector.broadcast %6 : vector<1x256xf32> to vector<8x256xf32>
    %148 = arith.mulf %122, %147 : vector<8x256xf32>
    %149 = vector.extract_strided_slice %122 {offsets = [0, 1], sizes = [8, 255], strides = [1, 1]} : vector<8x256xf32> to vector<8x255xf32>
    %150 = vector.extract_strided_slice %122 {offsets = [0, 0], sizes = [8, 1], strides = [1, 1]} : vector<8x256xf32> to vector<8x1xf32>
    %151 = tpu.concatenate %149, %150 in 1 : vector<8x255xf32>, vector<8x1xf32> -> vector<8x256xf32>
    %152 = vector.broadcast %7 : vector<1x256xf32> to vector<8x256xf32>
    %153 = arith.mulf %151, %152 : vector<8x256xf32>
    %154 = vector.extract_strided_slice %122 {offsets = [0, 15], sizes = [8, 241], strides = [1, 1]} : vector<8x256xf32> to vector<8x241xf32>
    %155 = vector.extract_strided_slice %122 {offsets = [0, 0], sizes = [8, 15], strides = [1, 1]} : vector<8x256xf32> to vector<8x15xf32>
    %156 = tpu.concatenate %154, %155 in 1 : vector<8x241xf32>, vector<8x15xf32> -> vector<8x256xf32>
    %157 = vector.broadcast %8 : vector<1x256xf32> to vector<8x256xf32>
    %158 = arith.mulf %156, %157 : vector<8x256xf32>
    %159 = vector.extract_strided_slice %122 {offsets = [0, 16], sizes = [8, 240], strides = [1, 1]} : vector<8x256xf32> to vector<8x240xf32>
    %160 = vector.extract_strided_slice %122 {offsets = [0, 0], sizes = [8, 16], strides = [1, 1]} : vector<8x256xf32> to vector<8x16xf32>
    %161 = tpu.concatenate %159, %160 in 1 : vector<8x240xf32>, vector<8x16xf32> -> vector<8x256xf32>
    %162 = vector.broadcast %9 : vector<1x256xf32> to vector<8x256xf32>
    %163 = arith.mulf %161, %162 : vector<8x256xf32>
    %164 = vector.extract_strided_slice %122 {offsets = [0, 17], sizes = [8, 239], strides = [1, 1]} : vector<8x256xf32> to vector<8x239xf32>
    %165 = vector.extract_strided_slice %122 {offsets = [0, 0], sizes = [8, 17], strides = [1, 1]} : vector<8x256xf32> to vector<8x17xf32>
    %166 = tpu.concatenate %164, %165 in 1 : vector<8x239xf32>, vector<8x17xf32> -> vector<8x256xf32>
    %167 = vector.broadcast %10 : vector<1x256xf32> to vector<8x256xf32>
    %168 = arith.mulf %166, %167 : vector<8x256xf32>
    %169 = tpu.concatenate %131, %136, %141, %146, %148, %153, %158, %163, %168 in 0 : vector<8x256xf32>, vector<8x256xf32>, vector<8x256xf32>, vector<8x256xf32>, vector<8x256xf32>, vector<8x256xf32>, vector<8x256xf32>, vector<8x256xf32>, vector<8x256xf32> -> vector<72x256xf32>
    %170 = arith.truncf %169 : vector<72x256xf32> to vector<72x256xbf16>
    %cst_35 = arith.constant dense<0.000000e+00> : vector<8x256xf32>
    %171 = tpu.matmul %124, %170, %cst_35 {dimension_numbers = #tpu.dot_dimension_numbers<[1], [0], [0], [1], [0, 0, 1, 1], [], []>} : vector<8x72xbf16>, vector<72x256xbf16>, vector<8x256xf32> -> vector<8x256xf32>
    %172 = vector.broadcast %126 : vector<8x1xf32> to vector<8x256xf32>
    %173 = arith.addf %171, %172 : vector<8x256xf32>
    %cst_36 = arith.constant 0.000000e+00 : f32
    %174 = vector.broadcast %cst_36 : f32 to vector<8x256xf32>
    %175 = arith.cmpf oge, %173, %174 : vector<8x256xf32>
    %cst_37 = arith.constant 0.00999999977 : f32
    %176 = vector.broadcast %cst_37 : f32 to vector<8x256xf32>
    %177 = arith.mulf %176, %173 : vector<8x256xf32>
    %178 = arith.select %175, %173, %177 : vector<8x256xi1>, vector<8x256xf32>
    %c0_38 = arith.constant 0 : index
    %c0_39 = arith.constant 0 : index
    %c0_40 = arith.constant 0 : index
    %179 = vector.load %arg10[%c0_38, %c0_39, %c0_40] : memref<1x8x8xbf16, #tpu.memory_space<vmem>>, vector<1x8x8xbf16>
    %180 = vector.shape_cast %179 : vector<1x8x8xbf16> to vector<8x8xbf16>
    %c0_41 = arith.constant 0 : index
    %c0_42 = arith.constant 0 : index
    %c0_43 = arith.constant 0 : index
    %181 = vector.load %arg11[%c0_41, %c0_42, %c0_43] : memref<1x8x1xf32, #tpu.memory_space<vmem>>, vector<1x8x1xf32>
    %182 = vector.shape_cast %181 : vector<1x8x1xf32> to vector<8x1xf32>
    %183 = arith.truncf %178 : vector<8x256xf32> to vector<8x256xbf16>
    %cst_44 = arith.constant dense<0.000000e+00> : vector<8x256xf32>
    %184 = tpu.matmul %180, %183, %cst_44 {dimension_numbers = #tpu.dot_dimension_numbers<[1], [0], [0], [1], [0, 0, 1, 1], [], []>} : vector<8x8xbf16>, vector<8x256xbf16>, vector<8x256xf32> -> vector<8x256xf32>
    %185 = vector.broadcast %182 : vector<8x1xf32> to vector<8x256xf32>
    %186 = arith.addf %184, %185 : vector<8x256xf32>
    %c0_45 = arith.constant 0 : index
    %c0_46 = arith.constant 0 : index
    %c0_47 = arith.constant 0 : index
    %187 = vector.load %arg2[%c0_45, %c0_46, %c0_47] : memref<1x1x1xf32, #tpu.memory_space<vmem>>, vector<1x1x1xf32>
    %188 = vector.shape_cast %187 : vector<1x1x1xf32> to vector<1x1xf32>
    %189 = vector.broadcast %188 : vector<1x1xf32> to vector<8x256xf32>
    %190 = arith.mulf %189, %186 : vector<8x256xf32>
    %cst_48 = arith.constant 1.000000e+00 : f32
    %191 = vector.broadcast %cst_48 : f32 to vector<1x1xf32>
    %192 = arith.subf %191, %188 : vector<1x1xf32>
    %193 = vector.broadcast %192 : vector<1x1xf32> to vector<8x256xf32>
    %194 = arith.mulf %193, %1 : vector<8x256xf32>
    %195 = arith.addf %190, %194 : vector<8x256xf32>
    %196 = arith.mulf %1, %1 : vector<8x256xf32>
    %197 = vector.shape_cast %196 : vector<8x256xf32> to vector<1x8x256xf32>
    %cst_49 = arith.constant dense<0.000000e+00> : vector<1xf32>
    %198 = vector.multi_reduction <add>, %197, %cst_49 [1, 2] : vector<1x8x256xf32> to vector<1xf32>
    %199 = vector.shape_cast %198 : vector<1xf32> to vector<1x1x1xf32>
    %200 = vector.extract %199[0, 0, 0] : f32 from vector<1x1x1xf32>
    %201 = vector.broadcast %200 : f32 to vector<1x1xf32>
    %202 = math.sqrt %201 : vector<1x1xf32>
    %203 = arith.mulf %195, %195 : vector<8x256xf32>
    %204 = vector.shape_cast %203 : vector<8x256xf32> to vector<1x8x256xf32>
    %cst_50 = arith.constant dense<0.000000e+00> : vector<1xf32>
    %205 = vector.multi_reduction <add>, %204, %cst_50 [1, 2] : vector<1x8x256xf32> to vector<1xf32>
    %206 = vector.shape_cast %205 : vector<1xf32> to vector<1x1x1xf32>
    %207 = vector.extract %206[0, 0, 0] : f32 from vector<1x1x1xf32>
    %208 = vector.broadcast %207 : f32 to vector<1x1xf32>
    %209 = math.sqrt %208 : vector<1x1xf32>
    %cst_51 = arith.constant 9.99999974E-6 : f32
    %210 = vector.broadcast %cst_51 : f32 to vector<1x1xf32>
    %211 = arith.addf %209, %210 : vector<1x1xf32>
    %212 = tpu.reciprocal %211 {approx = true} : vector<1x1xf32> -> vector<1x1xf32>
    %213 = arith.mulf %202, %212 : vector<1x1xf32>
    %214 = vector.extract_strided_slice %195 {offsets = [0, 0], sizes = [4, 256], strides = [1, 1]} : vector<8x256xf32> to vector<4x256xf32>
    %215 = vector.broadcast %213 : vector<1x1xf32> to vector<4x256xf32>
    %216 = arith.mulf %214, %215 : vector<4x256xf32>
    %c0_52 = arith.constant 0 : index
    %c0_53 = arith.constant 0 : index
    %c0_54 = arith.constant 0 : index
    %217 = vector.load %arg12[%c0_52, %c0_53, %c0_54] : memref<1x4x256xf32, #tpu.memory_space<vmem>>, vector<1x4x256xf32>
    %218 = vector.shape_cast %217 : vector<1x4x256xf32> to vector<4x256xf32>
    %219 = vector.shape_cast %216 : vector<4x256xf32> to vector<1x4x256xf32>
    tpu.vector_store %arg12[%c0_52, %c0_53, %c0_54], %219 {strides = array<i32>} : memref<1x4x256xf32, #tpu.memory_space<vmem>>, vector<1x4x256xf32>,
    return
  }
  func.func @transform_0(%arg0: i32) -> (i32, i32, i32) {
    %c0_i32 = arith.constant 0 : i32
    %c0_i32_0 = arith.constant 0 : i32
    %c0_i32_1 = arith.constant 0 : i32
    return %arg0, %c0_i32, %c0_i32_0 : i32, i32, i32
  }
  func.func @transform_1(%arg0: i32) -> (i32, i32, i32) {
    %c0_i32 = arith.constant 0 : i32
    %c0_i32_0 = arith.constant 0 : i32
    %c0_i32_1 = arith.constant 0 : i32
    return %arg0, %c0_i32, %c0_i32_0 : i32, i32, i32
  }
  func.func @transform_2(%arg0: i32) -> (i32, i32) {
    %c0_i32 = arith.constant 0 : i32
    %c0_i32_0 = arith.constant 0 : i32
    %c0_i32_1 = arith.constant 0 : i32
    return %c0_i32, %c0_i32_0 : i32, i32
  }
  func.func @transform_3(%arg0: i32) -> (i32, i32, i32) {
    %c0_i32 = arith.constant 0 : i32
    %c0_i32_0 = arith.constant 0 : i32
    %c0_i32_1 = arith.constant 0 : i32
    return %arg0, %c0_i32, %c0_i32_0 : i32, i32, i32
  }
  func.func @transform_4(%arg0: i32) -> (i32, i32, i32) {
    %c0_i32 = arith.constant 0 : i32
    %c0_i32_0 = arith.constant 0 : i32
    %c0_i32_1 = arith.constant 0 : i32
    return %arg0, %c0_i32, %c0_i32_0 : i32, i32, i32
  }
  func.func @transform_5(%arg0: i32) -> (i32, i32, i32) {
    %c0_i32 = arith.constant 0 : i32
    %c0_i32_0 = arith.constant 0 : i32
    %c0_i32_1 = arith.constant 0 : i32
    return %arg0, %c0_i32, %c0_i32_0 : i32, i32, i32
  }
  func.func @transform_6(%arg0: i32) -> (i32, i32, i32) {
    %c0_i32 = arith.constant 0 : i32
    %c0_i32_0 = arith.constant 0 : i32
    %c0_i32_1 = arith.constant 0 : i32
    return %arg0, %c0_i32, %c0_i32_0 : i32, i32, i32
  }
  func.func @transform_7(%arg0: i32) -> (i32, i32, i32) {
    %c0_i32 = arith.constant 0 : i32
    %c0_i32_0 = arith.constant 0 : i32
    %c0_i32_1 = arith.constant 0 : i32
    return %arg0, %c0_i32, %c0_i32_0 : i32, i32, i32
  }
  func.func @transform_8(%arg0: i32) -> (i32, i32, i32) {
    %c0_i32 = arith.constant 0 : i32
    %c0_i32_0 = arith.constant 0 : i32
    %c0_i32_1 = arith.constant 0 : i32
    return %arg0, %c0_i32, %c0_i32_0 : i32, i32, i32
  }
  func.func @transform_9(%arg0: i32) -> (i32, i32, i32) {
    %c0_i32 = arith.constant 0 : i32
    %c0_i32_0 = arith.constant 0 : i32
    %c0_i32_1 = arith.constant 0 : i32
    return %arg0, %c0_i32, %c0_i32_0 : i32, i32, i32
  }
  func.func @transform_10(%arg0: i32) -> (i32, i32, i32) {
    %c0_i32 = arith.constant 0 : i32
    %c0_i32_0 = arith.constant 0 : i32
    %c0_i32_1 = arith.constant 0 : i32
    return %arg0, %c0_i32, %c0_i32_0 : i32, i32, i32
  }
  func.func @transform_11(%arg0: i32) -> (i32, i32, i32) {
    %c0_i32 = arith.constant 0 : i32
    %c0_i32_0 = arith.constant 0 : i32
    %c0_i32_1 = arith.constant 0 : i32
    return %arg0, %c0_i32, %c0_i32_0 : i32, i32, i32
  }
}

</mosaic_0001>

<llo_original>
// kernel: tpu_custom_call.1
$region0: #{tpu_custom_call.1}
  #allocation0 [shape = 'u32[]', space=smem, size = 0x4, offset = 0x4, fixed_abs, tag = 'smem constant byte address 0x4 - core index']
  #allocation1 [shape = 'u32[72,128]{1,0:T(1,128)}', space=vmem, size = 0x9000, scoped, tag = 'internal scratch']
  %s0 = inlined_call_operand.vmem [shape: f32[2,8,256], index: 0, kind: input, shape index: {}]
  %s1 = inlined_call_operand.vmem [shape: f32[2,1,1], index: 1, kind: input, shape index: {}]
  %s2 = inlined_call_operand.vmem [shape: f32[9,256], index: 2, kind: input, shape index: {}]
  %s3 = inlined_call_operand.hbm [shape: bf16[2,8,72], index: 3, kind: input, shape index: {}]
  %s4 = inlined_call_operand.vmem [shape: f32[2,8,1], index: 4, kind: input, shape index: {}]
  %s5 = inlined_call_operand.hbm [shape: bf16[2,8,72], index: 5, kind: input, shape index: {}]
  %s6 = inlined_call_operand.vmem [shape: f32[2,8,1], index: 6, kind: input, shape index: {}]
  %s7 = inlined_call_operand.hbm [shape: bf16[2,8,72], index: 7, kind: input, shape index: {}]
  %s8 = inlined_call_operand.vmem [shape: f32[2,8,1], index: 8, kind: input, shape index: {}]
  %s9 = inlined_call_operand.vmem [shape: bf16[2,8,8], index: 9, kind: input, shape index: {}]
  %s10 = inlined_call_operand.vmem [shape: f32[2,8,1], index: 10, kind: input, shape index: {}]
  %s11 = inlined_call_operand.hbm [shape: f32[2,4,256], index: 11, kind: output, shape index: {}]
  %s12 = sld [smem:[#allocation0]]
  $region89: #{tpu_custom_call.1} parent=0
    _
  %s14 = ssub.s32 1, %s12
  %s15 = scalar_select 0, %s14, %s12
  $region1: #{tpu_custom_call.1} parent=0
    #allocation2 [shape = 'u8[4096]{0}', space=vmem, size = 0x1000, scoped, tag = 'input window, operand 3']
    #allocation3 [shape = 's32[2]{0}', space=sflag, size = 0x8, scoped, tag = 'scoped memory for tpu_custom_call.1']
    #allocation4 [shape = 's32[2]{0}', space=sflag, size = 0x8, scoped, tag = 'scoped memory for tpu_custom_call.1']
    #allocation5 [shape = 'u8[4096]{0}', space=vmem, size = 0x1000, scoped, tag = 'input window, operand 5']
    #allocation6 [shape = 's32[2]{0}', space=sflag, size = 0x8, scoped, tag = 'scoped memory for tpu_custom_call.1']
    #allocation7 [shape = 'u8[4096]{0}', space=vmem, size = 0x1000, scoped, tag = 'input window, operand 7']
    #allocation8 [shape = 'u8[8192]{0}', space=vmem, size = 0x2000, scoped, tag = 'output window, operand 0']
    %16 = vsyncpa [#allocation3], 0
    %s17 = scalar_lea.sflag [#allocation3], 1
    %18 = vsyncpa %s17, 0
    %19 = vsyncpa [#allocation6], 0
    %s20 = scalar_lea.sflag [#allocation6], 1
    %21 = vsyncpa %s20, 0
    %22 = vsyncpa [#allocation4], 0
    %s23 = scalar_lea.sflag [#allocation4], 1
    %24 = vsyncpa %s23, 0
    loop: start=0, step=1, limit=4
    $region2: #{tpu_custom_call.1} parent=1 // loop_pre_header
      _
    $region3: #{tpu_custom_call.1} parent=1 // loop_header
      %s26 = sphi 0, %s30
      %p27 = scmp.ge.s32.totalorder %s26, 4
      %s36 = sphi 0, %s38
      %s39 = sphi 0, %s36
      %s40 = sphi 0, %s39
      %s56 = sphi 0, %s40
      %s62 = sphi 0, %s64
      %s65 = sphi 0, %s62
      %s66 = sphi 0, %s65
      %s82 = sphi 0, %s66
      %s86 = sphi 0, %s86
      %s88 = sphi 0, %s86
      %s89 = sphi 0, %s88
      %s103 = sphi 0, %s89
      %s109 = sphi 0, %s111
      %s112 = sphi 0, %s109
      %s113 = sphi 0, %s112
      %s129 = sphi 0, %s113
      %s135 = sphi 0, %s137
      %s138 = sphi 0, %s135
      %s139 = sphi 0, %s138
      %s155 = sphi 0, %s139
      %s161 = sphi 0, %s163
      %s164 = sphi 0, %s161
      %s165 = sphi 0, %s164
      %s181 = sphi 0, %s165
      %s187 = sphi 0, %s189
      %s190 = sphi 0, %s187
      %s191 = sphi 0, %s190
      %s207 = sphi 0, %s191
      %s213 = sphi 0, %s215
      %s216 = sphi 0, %s213
      %s217 = sphi 0, %s216
      %s233 = sphi 0, %s217
      %s239 = sphi 0, %s241
      %s242 = sphi 0, %s239
      %s243 = sphi 0, %s242
      %s259 = sphi 0, %s243
      %s265 = sphi 0, %s267
      %s268 = sphi 0, %s265
      %s269 = sphi 0, %s268
      %s285 = sphi 0, %s269
      %s291 = sphi 0, %s293
      %s294 = sphi 0, %s291
      %s295 = sphi 0, %s294
      %s311 = sphi 0, %s295
      %s317 = sphi 0, %s319
      %s320 = sphi 0, %s317
      %s321 = sphi 0, %s320
      %s337 = sphi 0, %s321
    $region4: #{tpu_custom_call.1} parent=1 // loop_header_branch
      %29 = sbr.rel (%p27) target = $region8
    $region5: #{tpu_custom_call.1} parent=1 // loop_body
      %s31 = ssub.s32 %s26, 1
      %s32 = ssub.s32 %s26, 2
      %s33 = sadd.s32 %s26, 1
      %s34 = ssub.s32 %s26, %s33
      %p35 = scmp.eq.s32.totalorder %s34, 0
      %s37 = sadd.s32 %s36, 1
      %s38 = scalar_select %p35, %s36, %s37
      %p41 = pneg %p35
      %p42 = scmp.eq.s32.totalorder %s26, 1
      %p43 = por %p41, %p42
      %p44 = scmp.ne.s32.totalorder %s36, %s39
      %p45 = scmp.eq.s32.totalorder %s26, 0
      %p46 = por %p44, %p45
      %p47 = scmp.ne.s32.totalorder %s36, %s39
      %p48 = scmp.eq.s32.totalorder %s31, 1
      %p49 = por %p47, %p48
      %p50 = scmp.ne.s32.totalorder %s39, %s40
      %p51 = scmp.eq.s32.totalorder %s31, 0
      %p52 = por %p50, %p51
      %p53 = scmp.ne.s32.totalorder %s39, %s40
      %p54 = scmp.eq.s32.totalorder %s32, 1
      %p55 = por %p53, %p54
      %p57 = scmp.ne.s32.totalorder %s40, %s56
      %p58 = scmp.eq.s32.totalorder %s32, 0
      %p59 = por %p57, %p58
      %s60 = ssub.s32 %s26, %s33
      %p61 = scmp.eq.s32.totalorder %s60, 0
      %s63 = sadd.s32 %s62, 1
      %s64 = scalar_select %p61, %s62, %s63
      %p67 = pneg %p61
      %p68 = scmp.eq.s32.totalorder %s26, 1
      %p69 = por %p67, %p68
      %p70 = scmp.ne.s32.totalorder %s62, %s65
      %p71 = scmp.eq.s32.totalorder %s26, 0
      %p72 = por %p70, %p71
      %p73 = scmp.ne.s32.totalorder %s62, %s65
      %p74 = scmp.eq.s32.totalorder %s31, 1
      %p75 = por %p73, %p74
      %p76 = scmp.ne.s32.totalorder %s65, %s66
      %p77 = scmp.eq.s32.totalorder %s31, 0
      %p78 = por %p76, %p77
      %p79 = scmp.ne.s32.totalorder %s65, %s66
      %p80 = scmp.eq.s32.totalorder %s32, 1
      %p81 = por %p79, %p80
      %p83 = scmp.ne.s32.totalorder %s66, %s82
      %p84 = scmp.eq.s32.totalorder %s32, 0
      %p85 = por %p83, %p84
      %s87 = sadd.s32 %s86, 1
      %p90 = scmp.eq.s32.totalorder %s26, 1
      %p91 = scmp.ne.s32.totalorder %s86, %s88
      %p92 = scmp.eq.s32.totalorder %s26, 0
      %p93 = por %p91, %p92
      %p94 = scmp.ne.s32.totalorder %s86, %s88
      %p95 = scmp.eq.s32.totalorder %s31, 1
      %p96 = por %p94, %p95
      %p97 = scmp.ne.s32.totalorder %s88, %s89
      %p98 = scmp.eq.s32.totalorder %s31, 0
      %p99 = por %p97, %p98
      %p100 = scmp.ne.s32.totalorder %s88, %s89
      %p101 = scmp.eq.s32.totalorder %s32, 1
      %p102 = por %p100, %p101
      %p104 = scmp.ne.s32.totalorder %s89, %s103
      %p105 = scmp.eq.s32.totalorder %s32, 0
      %p106 = por %p104, %p105
      %s107 = ssub.s32 %s26, %s33
      %p108 = scmp.eq.s32.totalorder %s107, 0
      %s110 = sadd.s32 %s109, 1
      %s111 = scalar_select %p108, %s109, %s110
      %p114 = pneg %p108
      %p115 = scmp.eq.s32.totalorder %s26, 1
      %p116 = por %p114, %p115
      %p117 = scmp.ne.s32.totalorder %s109, %s112
      %p118 = scmp.eq.s32.totalorder %s26, 0
      %p119 = por %p117, %p118
      %p120 = scmp.ne.s32.totalorder %s109, %s112
      %p121 = scmp.eq.s32.totalorder %s31, 1
      %p122 = por %p120, %p121
      %p123 = scmp.ne.s32.totalorder %s112, %s113
      %p124 = scmp.eq.s32.totalorder %s31, 0
      %p125 = por %p123, %p124
      %p126 = scmp.ne.s32.totalorder %s112, %s113
      %p127 = scmp.eq.s32.totalorder %s32, 1
      %p128 = por %p126, %p127
      %p130 = scmp.ne.s32.totalorder %s113, %s129
      %p131 = scmp.eq.s32.totalorder %s32, 0
      %p132 = por %p130, %p131
      %s133 = ssub.s32 %s26, %s33
      %p134 = scmp.eq.s32.totalorder %s133, 0
      %s136 = sadd.s32 %s135, 1
      %s137 = scalar_select %p134, %s135, %s136
      %p140 = pneg %p134
      %p141 = scmp.eq.s32.totalorder %s26, 1
      %p142 = por %p140, %p141
      %p143 = scmp.ne.s32.totalorder %s135, %s138
      %p144 = scmp.eq.s32.totalorder %s26, 0
      %p145 = por %p143, %p144
      %p146 = scmp.ne.s32.totalorder %s135, %s138
      %p147 = scmp.eq.s32.totalorder %s31, 1
      %p148 = por %p146, %p147
      %p149 = scmp.ne.s32.totalorder %s138, %s139
      %p150 = scmp.eq.s32.totalorder %s31, 0
      %p151 = por %p149, %p150
      %p152 = scmp.ne.s32.totalorder %s138, %s139
      %p153 = scmp.eq.s32.totalorder %s32, 1
      %p154 = por %p152, %p153
      %p156 = scmp.ne.s32.totalorder %s139, %s155
      %p157 = scmp.eq.s32.totalorder %s32, 0
      %p158 = por %p156, %p157
      %s159 = ssub.s32 %s26, %s33
      %p160 = scmp.eq.s32.totalorder %s159, 0
      %s162 = sadd.s32 %s161, 1
      %s163 = scalar_select %p160, %s161, %s162
      %p166 = pneg %p160
      %p167 = scmp.eq.s32.totalorder %s26, 1
      %p168 = por %p166, %p167
      %p169 = scmp.ne.s32.totalorder %s161, %s164
      %p170 = scmp.eq.s32.totalorder %s26, 0
      %p171 = por %p169, %p170
      %p172 = scmp.ne.s32.totalorder %s161, %s164
      %p173 = scmp.eq.s32.totalorder %s31, 1
      %p174 = por %p172, %p173
      %p175 = scmp.ne.s32.totalorder %s164, %s165
      %p176 = scmp.eq.s32.totalorder %s31, 0
      %p177 = por %p175, %p176
      %p178 = scmp.ne.s32.totalorder %s164, %s165
      %p179 = scmp.eq.s32.totalorder %s32, 1
      %p180 = por %p178, %p179
      %p182 = scmp.ne.s32.totalorder %s165, %s181
      %p183 = scmp.eq.s32.totalorder %s32, 0
      %p184 = por %p182, %p183
      %s185 = ssub.s32 %s26, %s33
      %p186 = scmp.eq.s32.totalorder %s185, 0
      %s188 = sadd.s32 %s187, 1
      %s189 = scalar_select %p186, %s187, %s188
      %p192 = pneg %p186
      %p193 = scmp.eq.s32.totalorder %s26, 1
      %p194 = por %p192, %p193
      %p195 = scmp.ne.s32.totalorder %s187, %s190
      %p196 = scmp.eq.s32.totalorder %s26, 0
      %p197 = por %p195, %p196
      %p198 = scmp.ne.s32.totalorder %s187, %s190
      %p199 = scmp.eq.s32.totalorder %s31, 1
      %p200 = por %p198, %p199
      %p201 = scmp.ne.s32.totalorder %s190, %s191
      %p202 = scmp.eq.s32.totalorder %s31, 0
      %p203 = por %p201, %p202
      %p204 = scmp.ne.s32.totalorder %s190, %s191
      %p205 = scmp.eq.s32.totalorder %s32, 1
      %p206 = por %p204, %p205
      %p208 = scmp.ne.s32.totalorder %s191, %s207
      %p209 = scmp.eq.s32.totalorder %s32, 0
      %p210 = por %p208, %p209
      %s211 = ssub.s32 %s26, %s33
      %p212 = scmp.eq.s32.totalorder %s211, 0
      %s214 = sadd.s32 %s213, 1
      %s215 = scalar_select %p212, %s213, %s214
      %p218 = pneg %p212
      %p219 = scmp.eq.s32.totalorder %s26, 1
      %p220 = por %p218, %p219
      %p221 = scmp.ne.s32.totalorder %s213, %s216
      %p222 = scmp.eq.s32.totalorder %s26, 0
      %p223 = por %p221, %p222
      %p224 = scmp.ne.s32.totalorder %s213, %s216
      %p225 = scmp.eq.s32.totalorder %s31, 1
      %p226 = por %p224, %p225
      %p227 = scmp.ne.s32.totalorder %s216, %s217
      %p228 = scmp.eq.s32.totalorder %s31, 0
      %p229 = por %p227, %p228
      %p230 = scmp.ne.s32.totalorder %s216, %s217
      %p231 = scmp.eq.s32.totalorder %s32, 1
      %p232 = por %p230, %p231
      %p234 = scmp.ne.s32.totalorder %s217, %s233
      %p235 = scmp.eq.s32.totalorder %s32, 0
      %p236 = por %p234, %p235
      %s237 = ssub.s32 %s26, %s33
      %p238 = scmp.eq.s32.totalorder %s237, 0
      %s240 = sadd.s32 %s239, 1
      %s241 = scalar_select %p238, %s239, %s240
      %p244 = pneg %p238
      %p245 = scmp.eq.s32.totalorder %s26, 1
      %p246 = por %p244, %p245
      %p247 = scmp.ne.s32.totalorder %s239, %s242
      %p248 = scmp.eq.s32.totalorder %s26, 0
      %p249 = por %p247, %p248
      %p250 = scmp.ne.s32.totalorder %s239, %s242
      %p251 = scmp.eq.s32.totalorder %s31, 1
      %p252 = por %p250, %p251
      %p253 = scmp.ne.s32.totalorder %s242, %s243
      %p254 = scmp.eq.s32.totalorder %s31, 0
      %p255 = por %p253, %p254
      %p256 = scmp.ne.s32.totalorder %s242, %s243
      %p257 = scmp.eq.s32.totalorder %s32, 1
      %p258 = por %p256, %p257
      %p260 = scmp.ne.s32.totalorder %s243, %s259
      %p261 = scmp.eq.s32.totalorder %s32, 0
      %p262 = por %p260, %p261
      %s263 = ssub.s32 %s26, %s33
      %p264 = scmp.eq.s32.totalorder %s263, 0
      %s266 = sadd.s32 %s265, 1
      %s267 = scalar_select %p264, %s265, %s266
      %p270 = pneg %p264
      %p271 = scmp.eq.s32.totalorder %s26, 1
      %p272 = por %p270, %p271
      %p273 = scmp.ne.s32.totalorder %s265, %s268
      %p274 = scmp.eq.s32.totalorder %s26, 0
      %p275 = por %p273, %p274
      %p276 = scmp.ne.s32.totalorder %s265, %s268
      %p277 = scmp.eq.s32.totalorder %s31, 1
      %p278 = por %p276, %p277
      %p279 = scmp.ne.s32.totalorder %s268, %s269
      %p280 = scmp.eq.s32.totalorder %s31, 0
      %p281 = por %p279, %p280
      %p282 = scmp.ne.s32.totalorder %s268, %s269
      %p283 = scmp.eq.s32.totalorder %s32, 1
      %p284 = por %p282, %p283
      %p286 = scmp.ne.s32.totalorder %s269, %s285
      %p287 = scmp.eq.s32.totalorder %s32, 0
      %p288 = por %p286, %p287
      %s289 = ssub.s32 %s26, %s33
      %p290 = scmp.eq.s32.totalorder %s289, 0
      %s292 = sadd.s32 %s291, 1
      %s293 = scalar_select %p290, %s291, %s292
      %p296 = pneg %p290
      %p297 = scmp.eq.s32.totalorder %s26, 1
      %p298 = por %p296, %p297
      %p299 = scmp.ne.s32.totalorder %s291, %s294
      %p300 = scmp.eq.s32.totalorder %s26, 0
      %p301 = por %p299, %p300
      %p302 = scmp.ne.s32.totalorder %s291, %s294
      %p303 = scmp.eq.s32.totalorder %s31, 1
      %p304 = por %p302, %p303
      %p305 = scmp.ne.s32.totalorder %s294, %s295
      %p306 = scmp.eq.s32.totalorder %s31, 0
      %p307 = por %p305, %p306
      %p308 = scmp.ne.s32.totalorder %s294, %s295
      %p309 = scmp.eq.s32.totalorder %s32, 1
      %p310 = por %p308, %p309
      %p312 = scmp.ne.s32.totalorder %s295, %s311
      %p313 = scmp.eq.s32.totalorder %s32, 0
      %p314 = por %p312, %p313
      %s315 = ssub.s32 %s26, %s33
      %p316 = scmp.eq.s32.totalorder %s315, 0
      %s318 = sadd.s32 %s317, 1
      %s319 = scalar_select %p316, %s317, %s318
      %p322 = pneg %p316
      %p323 = scmp.eq.s32.totalorder %s26, 1
      %p324 = por %p322, %p323
      %p325 = scmp.ne.s32.totalorder %s317, %s320
      %p326 = scmp.eq.s32.totalorder %s26, 0
      %p327 = por %p325, %p326
      %p328 = scmp.ne.s32.totalorder %s317, %s320
      %p329 = scmp.eq.s32.totalorder %s31, 1
      %p330 = por %p328, %p329
      %p331 = scmp.ne.s32.totalorder %s320, %s321
      %p332 = scmp.eq.s32.totalorder %s31, 0
      %p333 = por %p331, %p332
      %p334 = scmp.ne.s32.totalorder %s320, %s321
      %p335 = scmp.eq.s32.totalorder %s32, 1
      %p336 = por %p334, %p335
      %p338 = scmp.ne.s32.totalorder %s321, %s337
      %p339 = scmp.eq.s32.totalorder %s32, 0
      %p340 = por %p338, %p339
      %p341 = scmp.le.s32.totalorder 1, %s26
      %p342 = scmp.lt.s32.totalorder %s26, 3
      %p343 = pnand %p341, %p342
      %p344 = pneg %p343
      // Predicated region
      $region9: #{tpu_custom_call.1} parent=5 // pred_check
        _
      $region10: #{tpu_custom_call.1} parent=5 // pred_check_branch
        %346 = sbr.rel (%p343) target = $region12
      $region11: #{tpu_custom_call.1} parent=5 // pred_region
        %s347 = ssub.s32 %s26, 1
        // Predicated region
        $region13: #{tpu_custom_call.1} parent=11 // pred_check
          %p348 = pneg %p99
        $region14: #{tpu_custom_call.1} parent=11 // pred_check_branch
          %350 = sbr.rel (%p348) target = $region16
        $region15: #{tpu_custom_call.1} parent=11 // pred_region
          _
        $region16: #{tpu_custom_call.1} parent=11 // pred_fallthru
          _
      $region12: #{tpu_custom_call.1} parent=5 // pred_fallthru
        _
      %p351 = scmp.lt.s32.totalorder %s26, 2
      // Predicated region
      $region17: #{tpu_custom_call.1} parent=5 // pred_check
        %p352 = pneg %p351
      $region18: #{tpu_custom_call.1} parent=5 // pred_check_branch
        %354 = sbr.rel (%p352) target = $region20
      $region19: #{tpu_custom_call.1} parent=5 // pred_region
        // Predicated region
        $region21: #{tpu_custom_call.1} parent=19 // pred_check
          %p355 = pneg %p46
        $region22: #{tpu_custom_call.1} parent=19 // pred_check_branch
          %357 = sbr.rel (%p355) target = $region24
        $region23: #{tpu_custom_call.1} parent=19 // pred_region
          %p358 = scmp.lt.s32.totalorder %s26, 1
          %s359 = scalar_select %p358, %s26, 1
          %s360 = smul.addr %s359, 2
          %s361 = smul.addr %s360, 8
          %s362 = scalar_lea.vmem %s0, %s361
        $region24: #{tpu_custom_call.1} parent=19 // pred_fallthru
          _
        // Predicated region
        $region25: #{tpu_custom_call.1} parent=19 // pred_check
          %p363 = pneg %p72
        $region26: #{tpu_custom_call.1} parent=19 // pred_check_branch
          %365 = sbr.rel (%p363) target = $region28
        $region27: #{tpu_custom_call.1} parent=19 // pred_region
          %p366 = scmp.lt.s32.totalorder %s26, 1
          %s367 = scalar_select %p366, %s26, 1
          %s368 = scalar_lea.vmem %s1, %s367
        $region28: #{tpu_custom_call.1} parent=19 // pred_fallthru
          _
        // Predicated region
        $region29: #{tpu_custom_call.1} parent=19 // pred_check
          %p369 = pneg %p119
        $region30: #{tpu_custom_call.1} parent=19 // pred_check_branch
          %371 = sbr.rel (%p369) target = $region32
        $region31: #{tpu_custom_call.1} parent=19 // pred_region
          %s372 = sand.u32 %s109, 1
          %s373 = scalar_lea.sflag [#allocation3], %s372
          %s374 = sand.u32 %s109, 1
          %s375 = smul.addr %s374, 4
          %s376 = scalar_lea.vmem [#allocation2], %s375
          %378 = vsyncadd %s373, 0
          %s379 = smul.addr %s26, 4
          %s380 = scalar_lea.hbm %s3, %s379
          %s382 = sshll.u32 %s380, 4
          %s383 = int_to_ptr.hbm [resolvable:$true] %s382
          %s384 = sshll.u32 %s376, 4
          %s385 = int_to_ptr.vmem [resolvable:$true] %s384
          %387 = dma.hbm_to_vmem [thread:$0]  %s383, 64, %s385, %s373
        $region32: #{tpu_custom_call.1} parent=19 // pred_fallthru
          _
        // Predicated region
        $region33: #{tpu_custom_call.1} parent=19 // pred_check
          %p388 = pneg %p145
        $region34: #{tpu_custom_call.1} parent=19 // pred_check_branch
          %390 = sbr.rel (%p388) target = $region36
        $region35: #{tpu_custom_call.1} parent=19 // pred_region
          %p391 = scmp.lt.s32.totalorder %s26, 1
          %s392 = scalar_select %p391, %s26, 1
          %s393 = smul.addr %s392, 8
          %s394 = scalar_lea.vmem %s4, %s393
        $region36: #{tpu_custom_call.1} parent=19 // pred_fallthru
          _
        // Predicated region
        $region37: #{tpu_custom_call.1} parent=19 // pred_check
          %p395 = pneg %p171
        $region38: #{tpu_custom_call.1} parent=19 // pred_check_branch
          %397 = sbr.rel (%p395) target = $region40
        $region39: #{tpu_custom_call.1} parent=19 // pred_region
          %s398 = sand.u32 %s26, 1
          %s399 = scalar_lea.sflag [#allocation6], %s398
          %s400 = sand.u32 %s161, 1
          %s401 = smul.addr %s400, 4
          %s402 = scalar_lea.vmem [#allocation5], %s401
          %404 = vsyncadd %s399, 0
          %s405 = smul.addr %s26, 4
          %s406 = scalar_lea.hbm %s5, %s405
          %s408 = sshll.u32 %s406, 4
          %s409 = int_to_ptr.hbm [resolvable:$true] %s408
          %s410 = sshll.u32 %s402, 4
          %s411 = int_to_ptr.vmem [resolvable:$true] %s410
          %413 = dma.hbm_to_vmem [thread:$0]  %s409, 64, %s411, %s399
        $region40: #{tpu_custom_call.1} parent=19 // pred_fallthru
          _
        // Predicated region
        $region41: #{tpu_custom_call.1} parent=19 // pred_check
          %p414 = pneg %p197
        $region42: #{tpu_custom_call.1} parent=19 // pred_check_branch
          %416 = sbr.rel (%p414) target = $region44
        $region43: #{tpu_custom_call.1} parent=19 // pred_region
          %p417 = scmp.lt.s32.totalorder %s26, 1
          %s418 = scalar_select %p417, %s26, 1
          %s419 = smul.addr %s418, 8
          %s420 = scalar_lea.vmem %s6, %s419
        $region44: #{tpu_custom_call.1} parent=19 // pred_fallthru
          _
        // Predicated region
        $region45: #{tpu_custom_call.1} parent=19 // pred_check
          %p421 = pneg %p223
        $region46: #{tpu_custom_call.1} parent=19 // pred_check_branch
          %423 = sbr.rel (%p421) target = $region48
        $region47: #{tpu_custom_call.1} parent=19 // pred_region
          %s424 = sand.u32 %s26, 1
          %s425 = scalar_lea.sflag [#allocation6], %s424
          %s426 = sand.u32 %s213, 1
          %s427 = smul.addr %s426, 4
          %s428 = scalar_lea.vmem [#allocation7], %s427
          %430 = vsyncadd %s425, 0
          %s431 = smul.addr %s26, 4
          %s432 = scalar_lea.hbm %s7, %s431
          %s434 = sshll.u32 %s432, 4
          %s435 = int_to_ptr.hbm [resolvable:$true] %s434
          %s436 = sshll.u32 %s428, 4
          %s437 = int_to_ptr.vmem [resolvable:$true] %s436
          %439 = dma.hbm_to_vmem [thread:$0]  %s435, 64, %s437, %s425
        $region48: #{tpu_custom_call.1} parent=19 // pred_fallthru
          _
        // Predicated region
        $region49: #{tpu_custom_call.1} parent=19 // pred_check
          %p440 = pneg %p249
        $region50: #{tpu_custom_call.1} parent=19 // pred_check_branch
          %442 = sbr.rel (%p440) target = $region52
        $region51: #{tpu_custom_call.1} parent=19 // pred_region
          %p443 = scmp.lt.s32.totalorder %s26, 1
          %s444 = scalar_select %p443, %s26, 1
          %s445 = smul.addr %s444, 8
          %s446 = scalar_lea.vmem %s8, %s445
        $region52: #{tpu_custom_call.1} parent=19 // pred_fallthru
          _
        // Predicated region
        $region53: #{tpu_custom_call.1} parent=19 // pred_check
          %p447 = pneg %p275
        $region54: #{tpu_custom_call.1} parent=19 // pred_check_branch
          %449 = sbr.rel (%p447) target = $region56
        $region55: #{tpu_custom_call.1} parent=19 // pred_region
          %p450 = scmp.lt.s32.totalorder %s26, 1
          %s451 = scalar_select %p450, %s26, 1
          %s452 = smul.addr %s451, 4
          %s453 = scalar_lea.vmem %s9, %s452
        $region56: #{tpu_custom_call.1} parent=19 // pred_fallthru
          _
        // Predicated region
        $region57: #{tpu_custom_call.1} parent=19 // pred_check
          %p454 = pneg %p301
        $region58: #{tpu_custom_call.1} parent=19 // pred_check_branch
          %456 = sbr.rel (%p454) target = $region60
        $region59: #{tpu_custom_call.1} parent=19 // pred_region
          %p457 = scmp.lt.s32.totalorder %s26, 1
          %s458 = scalar_select %p457, %s26, 1
          %s459 = smul.addr %s458, 8
          %s460 = scalar_lea.vmem %s10, %s459
        $region60: #{tpu_custom_call.1} parent=19 // pred_fallthru
          _
      $region20: #{tpu_custom_call.1} parent=5 // pred_fallthru
        _
      %p461 = scmp.le.s32.totalorder 1, %s26
      %p462 = scmp.lt.s32.totalorder %s26, 3
      %p463 = pnand %p461, %p462
      %p464 = pneg %p463
      // Predicated region
      $region61: #{tpu_custom_call.1} parent=5 // pred_check
        _
      $region62: #{tpu_custom_call.1} parent=5 // pred_check_branch
        %466 = sbr.rel (%p463) target = $region64
      $region63: #{tpu_custom_call.1} parent=5 // pred_region
        %s467 = ssub.s32 %s26, 1
        %s468 = sand.u32 %s112, 1
        %s469 = scalar_lea.sflag [#allocation3], %s468
        %s470 = sand.u32 %s112, 1
        %s471 = smul.addr %s470, 4
        %s472 = scalar_lea.vmem [#allocation2], %s471
        // Predicated region
        $region65: #{tpu_custom_call.1} parent=63 // pred_check
          %p473 = pneg %p125
        $region66: #{tpu_custom_call.1} parent=63 // pred_check_branch
          %475 = sbr.rel (%p473) target = $region68
        $region67: #{tpu_custom_call.1} parent=63 // pred_region
          %477 = dma.done %s469, 64
        $region68: #{tpu_custom_call.1} parent=63 // pred_fallthru
          _
        %s478 = sand.u32 %s31, 1
        %s479 = scalar_lea.sflag [#allocation6], %s478
        %s480 = sand.u32 %s164, 1
        %s481 = smul.addr %s480, 4
        %s482 = scalar_lea.vmem [#allocation5], %s481
        // Predicated region
        $region69: #{tpu_custom_call.1} parent=63 // pred_check
          %p483 = pneg %p177
        $region70: #{tpu_custom_call.1} parent=63 // pred_check_branch
          %485 = sbr.rel (%p483) target = $region72
        $region71: #{tpu_custom_call.1} parent=63 // pred_region
          %487 = dma.done %s479, 64
        $region72: #{tpu_custom_call.1} parent=63 // pred_fallthru
          _
        %s488 = sand.u32 %s31, 1
        %s489 = scalar_lea.sflag [#allocation6], %s488
        %s490 = sand.u32 %s216, 1
        %s491 = smul.addr %s490, 4
        %s492 = scalar_lea.vmem [#allocation7], %s491
        // Predicated region
        $region73: #{tpu_custom_call.1} parent=63 // pred_check
          %p493 = pneg %p229
        $region74: #{tpu_custom_call.1} parent=63 // pred_check_branch
          %495 = sbr.rel (%p493) target = $region76
        $region75: #{tpu_custom_call.1} parent=63 // pred_region
          %497 = dma.done %s489, 64
        $region76: #{tpu_custom_call.1} parent=63 // pred_fallthru
          _
        %p498 = scmp.lt.s32.totalorder %s31, 1
        %s499 = scalar_select %p498, %s31, 1
        %s500 = smul.addr %s499, 2
        %s501 = smul.addr %s500, 8
        %s502 = scalar_lea.vmem %s0, %s501
        %p503 = pneg %p52
        %p504 = pneg %p49
        %p505 = scmp.lt.s32.totalorder %s31, 1
        %s506 = scalar_select %p505, %s31, 1
        %s507 = scalar_lea.vmem %s1, %s506
        %p508 = pneg %p78
        %p509 = pneg %p75
        %p510 = pneg %p99
        %p511 = pneg %p96
        %s512 = sand.u32 %s112, 1
        %s513 = scalar_lea.sflag [#allocation3], %s512
        %s514 = sand.u32 %s112, 1
        %s515 = smul.addr %s514, 4
        %s516 = scalar_lea.vmem [#allocation2], %s515
        %p517 = pneg %p125
        %p518 = pneg %p122
        %p519 = scmp.lt.s32.totalorder %s31, 1
        %s520 = scalar_select %p519, %s31, 1
        %s521 = smul.addr %s520, 8
        %s522 = scalar_lea.vmem %s4, %s521
        %p523 = pneg %p151
        %p524 = pneg %p148
        %s525 = sand.u32 %s31, 1
        %s526 = scalar_lea.sflag [#allocation6], %s525
        %s527 = sand.u32 %s164, 1
        %s528 = smul.addr %s527, 4
        %s529 = scalar_lea.vmem [#allocation5], %s528
        %p530 = pneg %p177
        %p531 = pneg %p174
        %p532 = scmp.lt.s32.totalorder %s31, 1
        %s533 = scalar_select %p532, %s31, 1
        %s534 = smul.addr %s533, 8
        %s535 = scalar_lea.vmem %s6, %s534
        %p536 = pneg %p203
        %p537 = pneg %p200
        %s538 = sand.u32 %s31, 1
        %s539 = scalar_lea.sflag [#allocation6], %s538
        %s540 = sand.u32 %s216, 1
        %s541 = smul.addr %s540, 4
        %s542 = scalar_lea.vmem [#allocation7], %s541
        %p543 = pneg %p229
        %p544 = pneg %p226
        %p545 = scmp.lt.s32.totalorder %s31, 1
        %s546 = scalar_select %p545, %s31, 1
        %s547 = smul.addr %s546, 8
        %s548 = scalar_lea.vmem %s8, %s547
        %p549 = pneg %p255
        %p550 = pneg %p252
        %p551 = scmp.lt.s32.totalorder %s31, 1
        %s552 = scalar_select %p551, %s31, 1
        %s553 = smul.addr %s552, 4
        %s554 = scalar_lea.vmem %s9, %s553
        %p555 = pneg %p281
        %p556 = pneg %p278
        %p557 = scmp.lt.s32.totalorder %s31, 1
        %s558 = scalar_select %p557, %s31, 1
        %s559 = smul.addr %s558, 8
        %s560 = scalar_lea.vmem %s10, %s559
        %p561 = pneg %p307
        %p562 = pneg %p304
        %p563 = pneg %p333
        %p564 = pneg %p330
        %s565 = sand.u32 %s320, 1
        %s566 = scalar_lea.sflag [#allocation4], %s565
        %s567 = sand.u32 %s320, 1
        %s568 = smul.addr %s567, 8
        %s569 = scalar_lea.vmem [#allocation8], %s568
        %p570 = scmp.lt.s32.totalorder %s31, 1
        %s571 = scalar_select %p570, %s31, 1
        %s572 = smul.addr %s571, 2
        %s573 = smul.addr %s572, 8
        %s574 = scalar_lea.vmem %s0, %s573
        %p575 = scmp.lt.s32.totalorder %s31, 1
        %s576 = scalar_select %p575, %s31, 1
        %s577 = scalar_lea.vmem %s1, %s576
        %p578 = scmp.lt.s32.totalorder %s31, 1
        %s579 = scalar_select %p578, %s31, 1
        %s580 = smul.addr %s579, 8
        %s581 = scalar_lea.vmem %s4, %s580
        %p582 = scmp.lt.s32.totalorder %s31, 1
        %s583 = scalar_select %p582, %s31, 1
        %s584 = smul.addr %s583, 8
        %s585 = scalar_lea.vmem %s6, %s584
        %p586 = scmp.lt.s32.totalorder %s31, 1
        %s587 = scalar_select %p586, %s31, 1
        %s588 = smul.addr %s587, 8
        %s589 = scalar_lea.vmem %s8, %s588
        %p590 = scmp.lt.s32.totalorder %s31, 1
        %s591 = scalar_select %p590, %s31, 1
        %s592 = smul.addr %s591, 4
        %s593 = scalar_lea.vmem %s9, %s592
        %p594 = scmp.lt.s32.totalorder %s31, 1
        %s595 = scalar_select %p594, %s31, 1
        %s596 = smul.addr %s595, 8
        %s597 = scalar_lea.vmem %s10, %s596
        %v599 = vld [vmem:[%s574] sm:$0xff]
        %v600 = vld [vmem:[%s574 + $0x8] sm:$0xff]
        %v601 = vld [vmem:[%s2] ss:$8 sm:$0x3]
        %s602 = scalar_lea.vmem %s2, 1
        %v603 = vld [vmem:[%s602] ss:$8 sm:$0x3]
        %s604 = scalar_lea.vmem %s2, 2
        %v605 = vld [vmem:[%s604] ss:$8 sm:$0x3]
        %s606 = scalar_lea.vmem %s2, 3
        %v607 = vld [vmem:[%s606] ss:$8 sm:$0x3]
        %s608 = scalar_lea.vmem %s2, 4
        %v609 = vld [vmem:[%s608] ss:$8 sm:$0x3]
        %s610 = scalar_lea.vmem %s2, 5
        %v611 = vld [vmem:[%s610] ss:$8 sm:$0x3]
        %s612 = scalar_lea.vmem %s2, 6
        %v613 = vld [vmem:[%s612] ss:$8 sm:$0x3]
        %s614 = scalar_lea.vmem %s2, 7
        %v615 = vld [vmem:[%s614] ss:$8 sm:$0x3]
        %s616 = scalar_lea.vmem %s2, 16
        %v617 = vld [vmem:[%s616] ss:$8 sm:$0x3]
        %v618 = vld [vmem:[%s472] sm:$0xf]
        %v619 = vld [vmem:[%s581] sm:$0xff]
        %621 = vrot.lane.b32.xlu0 %v600, 17
        %v622 = vpop.permute.xlu0 %621
        %625 = vrot.lane.b32.xlu0 %v599, 17
        %v626 = vpop.permute.xlu0 %625
        %vm627 = vcmask 138240
        %v628 = vsel %vm627, %v626, %v622
        %v631 = vsel %vm627, %v622, %v626
        %v633 = vperm.slane %v601, 0
        %v634 = vperm.slane %v601, 1
        %v637 = vmul.f32 %v631, %v633
        %v638 = vmul.f32 %v628, %v634
        %639 = vrot.lane.b32.xlu0 %v600, 16
        %v640 = vpop.permute.xlu0 %639
        %642 = vrot.lane.b32.xlu0 %v599, 16
        %v643 = vpop.permute.xlu0 %642
        %vm644 = vcmask 130048
        %v645 = vsel %vm644, %v643, %v640
        %v648 = vsel %vm644, %v640, %v643
        %v650 = vperm.slane %v603, 0
        %v651 = vperm.slane %v603, 1
        %v654 = vmul.f32 %v648, %v650
        %v655 = vmul.f32 %v645, %v651
        %656 = vrot.lane.b32.xlu0 %v600, 15
        %v657 = vpop.permute.xlu0 %656
        %659 = vrot.lane.b32.xlu0 %v599, 15
        %v660 = vpop.permute.xlu0 %659
        %vm661 = vcmask 121856
        %v662 = vsel %vm661, %v660, %v657
        %v665 = vsel %vm661, %v657, %v660
        %v667 = vperm.slane %v605, 0
        %v668 = vperm.slane %v605, 1
        %v671 = vmul.f32 %v665, %v667
        %v672 = vmul.f32 %v662, %v668
        %673 = vrot.lane.b32.xlu0 %v600, 1
        %v674 = vpop.permute.xlu0 %673
        %676 = vrot.lane.b32.xlu0 %v599, 1
        %v677 = vpop.permute.xlu0 %676
        %vm678 = vcmask 7168
        %v679 = vsel %vm678, %v677, %v674
        %v682 = vsel %vm678, %v674, %v677
        %v684 = vperm.slane %v607, 0
        %v685 = vperm.slane %v607, 1
        %v688 = vmul.f32 %v682, %v684
        %v689 = vmul.f32 %v679, %v685
        %v691 = vperm.slane %v609, 0
        %v692 = vperm.slane %v609, 1
        %v695 = vmul.f32 %v599, %v691
        %v696 = vmul.f32 %v600, %v692
        %697 = vrot.lane.b32.xlu0 %v599, 127
        %v698 = vpop.permute.xlu0 %697
        %699 = vrot.lane.b32.xlu0 %v600, 127
        %v700 = vpop.permute.xlu0 %699
        %vm701 = vcmask 1039360
        %v702 = vsel %vm701, %v698, %v700
        %v706 = vsel %vm701, %v700, %v698
        %v708 = vperm.slane %v611, 0
        %v709 = vperm.slane %v611, 1
        %v712 = vmul.f32 %v702, %v708
        %v713 = vmul.f32 %v706, %v709
        %714 = vrot.lane.b32.xlu0 %v599, 113
        %v715 = vpop.permute.xlu0 %714
        %716 = vrot.lane.b32.xlu0 %v600, 113
        %v717 = vpop.permute.xlu0 %716
        %vm718 = vcmask 924672
        %v719 = vsel %vm718, %v715, %v717
        %v723 = vsel %vm718, %v717, %v715
        %v725 = vperm.slane %v613, 0
        %v726 = vperm.slane %v613, 1
        %v729 = vmul.f32 %v719, %v725
        %v730 = vmul.f32 %v723, %v726
        %731 = vrot.lane.b32.xlu0 %v599, 112
        %v732 = vpop.permute.xlu0 %731
        %733 = vrot.lane.b32.xlu0 %v600, 112
        %v734 = vpop.permute.xlu0 %733
        %vm735 = vcmask 916480
        %v736 = vsel %vm735, %v732, %v734
        %v740 = vsel %vm735, %v734, %v732
        %v742 = vperm.slane %v615, 0
        %v743 = vperm.slane %v615, 1
        %v746 = vmul.f32 %v736, %v742
        %v747 = vmul.f32 %v740, %v743
        %748 = vrot.lane.b32.xlu0 %v599, 111
        %v749 = vpop.permute.xlu0 %748
        %750 = vrot.lane.b32.xlu0 %v600, 111
        %v751 = vpop.permute.xlu0 %750
        %vm752 = vcmask 908288
        %v753 = vsel %vm752, %v749, %v751
        %v757 = vsel %vm752, %v751, %v749
        %v759 = vperm.slane %v617, 0
        %v760 = vperm.slane %v617, 1
        %v763 = vmul.f32 %v753, %v759
        %v764 = vmul.f32 %v757, %v760
        %v765 = vpack.c.bf16 %v654, %v637
        %v766 = vpack.c.bf16 %v655, %v638
        %v767 = vpack.c.bf16 %v688, %v671
        %v768 = vpack.c.bf16 %v689, %v672
        %v769 = vpack.c.bf16 %v712, %v695
        %v770 = vpack.c.bf16 %v713, %v696
        %v771 = vpack.c.bf16 %v746, %v729
        %v772 = vpack.c.bf16 %v747, %v730
        %v773 = vpack.c.bf16 %v763, %v763
        %v774 = vpack.c.bf16 %v764, %v764
        %776 = vset.pattern.permute.xlu0 0
        %777 = vperm.xlu0 %776, %v619
        %v778 = vpop.permute.xlu0 %777
        %vm780 = vcmask 588800
        %v782 = vsel %vm780, %v618, 0
        %vm784 = vcmask 1043456
        %v786 = vsel %vm784, %v773, 0
        %v789 = vsel %vm784, %v774, 0
        %791 = vmatpush.bf16.msra.mxu0 0
        %792 = vmatpush.bf16.msra.mxu0 0
        %793 = vmatpush.bf16.msra.mxu0 0
        %794 = vmatpush.bf16.msra.mxu0 %v786
        %795 = vmatpush.bf16.msra.mxu0 %v771
        %796 = vmatpush.bf16.msra.mxu0 %v769
        %797 = vmatpush.bf16.msra.mxu0 %v767
        %798 = vmatpush.bf16.msra.mxu0 %v765
        %799 = vmatmul.bf16.gmra.mxu0 %v782
        %v800 = vpop.f32.mrf.mxu0
        %v801 = vadd.f32 %v778, %v800
        %v802 = vpop.f32.mrf.mxu0
        %803 = vdwg.mxu0
        %804 = vmatpush.bf16.msra.mxu0 0
        %805 = vmatpush.bf16.msra.mxu0 0
        %806 = vmatpush.bf16.msra.mxu0 0
        %807 = vmatpush.bf16.msra.mxu0 %v789
        %808 = vmatpush.bf16.msra.mxu0 %v772
        %809 = vmatpush.bf16.msra.mxu0 %v770
        %810 = vmatpush.bf16.msra.mxu0 %v768
        %811 = vmatpush.bf16.msra.mxu0 %v766
        %812 = vmatmul.bf16.gmra.mxu0 %v782
        %v813 = vpop.f32.mrf.mxu0
        %v814 = vadd.f32 %v778, %v813
        %v815 = vpop.f32.mrf.mxu0
        %816 = vdwg.mxu0
        %vm817 = vcmp.ge.f32.partialorder %v801, 0.0
        %vm818 = vcmp.ge.f32.partialorder %v814, 0.0
        %v819 = vmul.f32 %v801, 0.01
        %v820 = vmul.f32 %v814, 0.01
        %v821 = vsel %vm817, %v801, %v819
        %v822 = vsel %vm818, %v814, %v820
        %v823 = vld [vmem:[%s482] sm:$0xf]
        %v824 = vld [vmem:[%s585] sm:$0xff]
        %826 = vrot.lane.b32.xlu0 %v822, 17
        %v827 = vpop.permute.xlu0 %826
        %830 = vrot.lane.b32.xlu0 %v821, 17
        %v831 = vpop.permute.xlu0 %830
        %v832 = vsel %vm627, %v831, %v827
        %v835 = vsel %vm627, %v827, %v831
        %v836 = vmul.f32 %v835, %v633
        %v837 = vmul.f32 %v832, %v634
        %838 = vrot.lane.b32.xlu0 %v822, 16
        %v839 = vpop.permute.xlu0 %838
        %841 = vrot.lane.b32.xlu0 %v821, 16
        %v842 = vpop.permute.xlu0 %841
        %v843 = vsel %vm644, %v842, %v839
        %v846 = vsel %vm644, %v839, %v842
        %v847 = vmul.f32 %v846, %v650
        %v848 = vmul.f32 %v843, %v651
        %849 = vrot.lane.b32.xlu0 %v822, 15
        %v850 = vpop.permute.xlu0 %849
        %852 = vrot.lane.b32.xlu0 %v821, 15
        %v853 = vpop.permute.xlu0 %852
        %v854 = vsel %vm661, %v853, %v850
        %v857 = vsel %vm661, %v850, %v853
        %v858 = vmul.f32 %v857, %v667
        %v859 = vmul.f32 %v854, %v668
        %860 = vrot.lane.b32.xlu0 %v822, 1
        %v861 = vpop.permute.xlu0 %860
        %863 = vrot.lane.b32.xlu0 %v821, 1
        %v864 = vpop.permute.xlu0 %863
        %v865 = vsel %vm678, %v864, %v861
        %v868 = vsel %vm678, %v861, %v864
        %v869 = vmul.f32 %v868, %v684
        %v870 = vmul.f32 %v865, %v685
        %v871 = vmul.f32 %v821, %v691
        %v872 = vmul.f32 %v822, %v692
        %873 = vrot.lane.b32.xlu0 %v821, 127
        %v874 = vpop.permute.xlu0 %873
        %875 = vrot.lane.b32.xlu0 %v822, 127
        %v876 = vpop.permute.xlu0 %875
        %v877 = vsel %vm701, %v874, %v876
        %v881 = vsel %vm701, %v876, %v874
        %v882 = vmul.f32 %v877, %v708
        %v883 = vmul.f32 %v881, %v709
        %884 = vrot.lane.b32.xlu0 %v821, 113
        %v885 = vpop.permute.xlu0 %884
        %886 = vrot.lane.b32.xlu0 %v822, 113
        %v887 = vpop.permute.xlu0 %886
        %v888 = vsel %vm718, %v885, %v887
        %v892 = vsel %vm718, %v887, %v885
        %v893 = vmul.f32 %v888, %v725
        %v894 = vmul.f32 %v892, %v726
        %895 = vrot.lane.b32.xlu0 %v821, 112
        %v896 = vpop.permute.xlu0 %895
        %897 = vrot.lane.b32.xlu0 %v822, 112
        %v898 = vpop.permute.xlu0 %897
        %v899 = vsel %vm735, %v896, %v898
        %v903 = vsel %vm735, %v898, %v896
        %v904 = vmul.f32 %v899, %v742
        %v905 = vmul.f32 %v903, %v743
        %906 = vrot.lane.b32.xlu0 %v821, 111
        %v907 = vpop.permute.xlu0 %906
        %908 = vrot.lane.b32.xlu0 %v822, 111
        %v909 = vpop.permute.xlu0 %908
        %v910 = vsel %vm752, %v907, %v909
        %v914 = vsel %vm752, %v909, %v907
        %v915 = vmul.f32 %v910, %v759
        %v916 = vmul.f32 %v914, %v760
        %v917 = vpack.c.bf16 %v847, %v836
        %v918 = vpack.c.bf16 %v848, %v837
        %v919 = vpack.c.bf16 %v869, %v858
        %v920 = vpack.c.bf16 %v870, %v859
        %v921 = vpack.c.bf16 %v882, %v871
        %v922 = vpack.c.bf16 %v883, %v872
        %v923 = vpack.c.bf16 %v904, %v893
        %v924 = vpack.c.bf16 %v905, %v894
        %v925 = vpack.c.bf16 %v915, %v915
        %v926 = vpack.c.bf16 %v916, %v916
        %928 = vset.pattern.permute.xlu0 0
        %929 = vperm.xlu0 %928, %v824
        %v930 = vpop.permute.xlu0 %929
        %v933 = vsel %vm780, %v823, 0
        %v936 = vsel %vm784, %v925, 0
        %v939 = vsel %vm784, %v926, 0
        %941 = vmatpush.bf16.msra.mxu0 0
        %942 = vmatpush.bf16.msra.mxu0 0
        %943 = vmatpush.bf16.msra.mxu0 0
        %944 = vmatpush.bf16.msra.mxu0 %v936
        %945 = vmatpush.bf16.msra.mxu0 %v923
        %946 = vmatpush.bf16.msra.mxu0 %v921
        %947 = vmatpush.bf16.msra.mxu0 %v919
        %948 = vmatpush.bf16.msra.mxu0 %v917
        %949 = vmatmul.bf16.gmra.mxu0 %v933
        %v950 = vpop.f32.mrf.mxu0
        %v951 = vadd.f32 %v930, %v950
        %v952 = vpop.f32.mrf.mxu0
        %953 = vdwg.mxu0
        %954 = vmatpush.bf16.msra.mxu0 0
        %955 = vmatpush.bf16.msra.mxu0 0
        %956 = vmatpush.bf16.msra.mxu0 0
        %957 = vmatpush.bf16.msra.mxu0 %v939
        %958 = vmatpush.bf16.msra.mxu0 %v924
        %959 = vmatpush.bf16.msra.mxu0 %v922
        %960 = vmatpush.bf16.msra.mxu0 %v920
        %961 = vmatpush.bf16.msra.mxu0 %v918
        %962 = vmatmul.bf16.gmra.mxu0 %v933
        %v963 = vpop.f32.mrf.mxu0
        %v964 = vadd.f32 %v930, %v963
        %v965 = vpop.f32.mrf.mxu0
        %966 = vdwg.mxu0
        %vm967 = vcmp.ge.f32.partialorder %v951, 0.0
        %vm968 = vcmp.ge.f32.partialorder %v964, 0.0
        %v969 = vmul.f32 %v951, 0.01
        %v970 = vmul.f32 %v964, 0.01
        %v971 = vsel %vm967, %v951, %v969
        %v972 = vsel %vm968, %v964, %v970
        %v973 = vld [vmem:[%s492] sm:$0xf]
        %v974 = vld [vmem:[%s589] sm:$0xff]
        %976 = vrot.lane.b32.xlu0 %v972, 17
        %v977 = vpop.permute.xlu0 %976
        %980 = vrot.lane.b32.xlu0 %v971, 17
        %v981 = vpop.permute.xlu0 %980
        %v982 = vsel %vm627, %v981, %v977
        %v985 = vsel %vm627, %v977, %v981
        %v986 = vmul.f32 %v985, %v633
        %v987 = vmul.f32 %v982, %v634
        %988 = vrot.lane.b32.xlu0 %v972, 16
        %v989 = vpop.permute.xlu0 %988
        %991 = vrot.lane.b32.xlu0 %v971, 16
        %v992 = vpop.permute.xlu0 %991
        %v993 = vsel %vm644, %v992, %v989
        %v996 = vsel %vm644, %v989, %v992
        %v997 = vmul.f32 %v996, %v650
        %v998 = vmul.f32 %v993, %v651
        %999 = vrot.lane.b32.xlu0 %v972, 15
        %v1000 = vpop.permute.xlu0 %999
        %1002 = vrot.lane.b32.xlu0 %v971, 15
        %v1003 = vpop.permute.xlu0 %1002
        %v1004 = vsel %vm661, %v1003, %v1000
        %v1007 = vsel %vm661, %v1000, %v1003
        %v1008 = vmul.f32 %v1007, %v667
        %v1009 = vmul.f32 %v1004, %v668
        %1010 = vrot.lane.b32.xlu0 %v972, 1
        %v1011 = vpop.permute.xlu0 %1010
        %1013 = vrot.lane.b32.xlu0 %v971, 1
        %v1014 = vpop.permute.xlu0 %1013
        %v1015 = vsel %vm678, %v1014, %v1011
        %v1018 = vsel %vm678, %v1011, %v1014
        %v1019 = vmul.f32 %v1018, %v684
        %v1020 = vmul.f32 %v1015, %v685
        %v1021 = vmul.f32 %v971, %v691
        %v1022 = vmul.f32 %v972, %v692
        %1023 = vrot.lane.b32.xlu0 %v971, 127
        %v1024 = vpop.permute.xlu0 %1023
        %1025 = vrot.lane.b32.xlu0 %v972, 127
        %v1026 = vpop.permute.xlu0 %1025
        %v1027 = vsel %vm701, %v1024, %v1026
        %v1031 = vsel %vm701, %v1026, %v1024
        %v1032 = vmul.f32 %v1027, %v708
        %v1033 = vmul.f32 %v1031, %v709
        %1034 = vrot.lane.b32.xlu0 %v971, 113
        %v1035 = vpop.permute.xlu0 %1034
        %1036 = vrot.lane.b32.xlu0 %v972, 113
        %v1037 = vpop.permute.xlu0 %1036
        %v1038 = vsel %vm718, %v1035, %v1037
        %v1042 = vsel %vm718, %v1037, %v1035
        %v1043 = vmul.f32 %v1038, %v725
        %v1044 = vmul.f32 %v1042, %v726
        %1045 = vrot.lane.b32.xlu0 %v971, 112
        %v1046 = vpop.permute.xlu0 %1045
        %1047 = vrot.lane.b32.xlu0 %v972, 112
        %v1048 = vpop.permute.xlu0 %1047
        %v1049 = vsel %vm735, %v1046, %v1048
        %v1053 = vsel %vm735, %v1048, %v1046
        %v1054 = vmul.f32 %v1049, %v742
        %v1055 = vmul.f32 %v1053, %v743
        %1056 = vrot.lane.b32.xlu0 %v971, 111
        %v1057 = vpop.permute.xlu0 %1056
        %1058 = vrot.lane.b32.xlu0 %v972, 111
        %v1059 = vpop.permute.xlu0 %1058
        %v1060 = vsel %vm752, %v1057, %v1059
        %v1064 = vsel %vm752, %v1059, %v1057
        %v1065 = vmul.f32 %v1060, %v759
        %v1066 = vmul.f32 %v1064, %v760
        %v1067 = vpack.c.bf16 %v997, %v986
        %v1068 = vpack.c.bf16 %v998, %v987
        %v1069 = vpack.c.bf16 %v1019, %v1008
        %v1070 = vpack.c.bf16 %v1020, %v1009
        %v1071 = vpack.c.bf16 %v1032, %v1021
        %v1072 = vpack.c.bf16 %v1033, %v1022
        %v1073 = vpack.c.bf16 %v1054, %v1043
        %v1074 = vpack.c.bf16 %v1055, %v1044
        %v1075 = vpack.c.bf16 %v1065, %v1065
        %v1076 = vpack.c.bf16 %v1066, %v1066
        %1078 = vset.pattern.permute.xlu0 0
        %1079 = vperm.xlu0 %1078, %v974
        %v1080 = vpop.permute.xlu0 %1079
        %v1083 = vsel %vm780, %v973, 0
        %v1086 = vsel %vm784, %v1075, 0
        %v1089 = vsel %vm784, %v1076, 0
        %1091 = vmatpush.bf16.msra.mxu0 0
        %1092 = vmatpush.bf16.msra.mxu0 0
        %1093 = vmatpush.bf16.msra.mxu0 0
        %1094 = vmatpush.bf16.msra.mxu0 %v1086
        %1095 = vmatpush.bf16.msra.mxu0 %v1073
        %1096 = vmatpush.bf16.msra.mxu0 %v1071
        %1097 = vmatpush.bf16.msra.mxu0 %v1069
        %1098 = vmatpush.bf16.msra.mxu0 %v1067
        %1099 = vmatmul.bf16.gmra.mxu0 %v1083
        %v1100 = vpop.f32.mrf.mxu0
        %v1101 = vadd.f32 %v1080, %v1100
        %v1102 = vpop.f32.mrf.mxu0
        %1103 = vdwg.mxu0
        %1104 = vmatpush.bf16.msra.mxu0 0
        %1105 = vmatpush.bf16.msra.mxu0 0
        %1106 = vmatpush.bf16.msra.mxu0 0
        %1107 = vmatpush.bf16.msra.mxu0 %v1089
        %1108 = vmatpush.bf16.msra.mxu0 %v1074
        %1109 = vmatpush.bf16.msra.mxu0 %v1072
        %1110 = vmatpush.bf16.msra.mxu0 %v1070
        %1111 = vmatpush.bf16.msra.mxu0 %v1068
        %1112 = vmatmul.bf16.gmra.mxu0 %v1083
        %v1113 = vpop.f32.mrf.mxu0
        %v1114 = vadd.f32 %v1080, %v1113
        %v1115 = vpop.f32.mrf.mxu0
        %1116 = vdwg.mxu0
        %vm1117 = vcmp.ge.f32.partialorder %v1101, 0.0
        %vm1118 = vcmp.ge.f32.partialorder %v1114, 0.0
        %v1119 = vmul.f32 %v1101, 0.01
        %v1120 = vmul.f32 %v1114, 0.01
        %v1121 = vsel %vm1117, %v1101, %v1119
        %v1122 = vsel %vm1118, %v1114, %v1120
        %v1123 = vld [vmem:[%s593] sm:$0xf]
        %v1124 = vld [vmem:[%s597] sm:$0xff]
        %v1125 = vpack.c.bf16 %v1121, %v1121
        %v1126 = vpack.c.bf16 %v1122, %v1122
        %1128 = vset.pattern.permute.xlu0 0
        %1129 = vperm.xlu0 %1128, %v1124
        %v1130 = vpop.permute.xlu0 %1129
        %vm1132 = vcmask 64512
        %v1134 = vsel %vm1132, %v1123, 0
        %v1137 = vsel %vm784, %v1125, 0
        %v1140 = vsel %vm784, %v1126, 0
        %1142 = vmatpush.bf16.msra.mxu0 0
        %1143 = vmatpush.bf16.msra.mxu0 0
        %1144 = vmatpush.bf16.msra.mxu0 0
        %1145 = vmatpush.bf16.msra.mxu0 0
        %1146 = vmatpush.bf16.msra.mxu0 0
        %1147 = vmatpush.bf16.msra.mxu0 0
        %1148 = vmatpush.bf16.msra.mxu0 0
        %1149 = vmatpush.bf16.msra.mxu0 %v1137
        %1150 = vmatmul.bf16.gmra.mxu0 %v1134
        %v1151 = vpop.f32.mrf.mxu0
        %v1152 = vadd.f32 %v1130, %v1151
        %v1153 = vpop.f32.mrf.mxu0
        %1154 = vdwg.mxu0
        %1155 = vmatpush.bf16.msra.mxu0 0
        %1156 = vmatpush.bf16.msra.mxu0 0
        %1157 = vmatpush.bf16.msra.mxu0 0
        %1158 = vmatpush.bf16.msra.mxu0 0
        %1159 = vmatpush.bf16.msra.mxu0 0
        %1160 = vmatpush.bf16.msra.mxu0 0
        %1161 = vmatpush.bf16.msra.mxu0 0
        %1162 = vmatpush.bf16.msra.mxu0 %v1140
        %1163 = vmatmul.bf16.gmra.mxu0 %v1134
        %v1164 = vpop.f32.mrf.mxu0
        %v1165 = vadd.f32 %v1130, %v1164
        %v1166 = vpop.f32.mrf.mxu0
        %1167 = vdwg.mxu0
        %v1168 = vld [vmem:[%s577] sm:$0x1]
        %v1170 = vperm.slane %v1168, 0
        %1171 = vset.pattern.permute.xlu0 0
        %1172 = vperm.xlu0 %1171, %v1170
        %v1173 = vpop.permute.xlu0 %1172
        %v1175 = vmul.f32 %v1173, %v1152
        %v1176 = vmul.f32 %v1173, %v1165
        %v1177 = vsub.f32 1.0, %v1168
        %v1179 = vperm.slane %v1177, 0
        %1180 = vset.pattern.permute.xlu0 0
        %1181 = vperm.xlu0 %1180, %v1179
        %v1182 = vpop.permute.xlu0 %1181
        %v1184 = vmul.f32 %v1182, %v599
        %v1185 = vmul.f32 %v1182, %v600
        %v1186 = vadd.f32 %v1175, %v1184
        %v1187 = vadd.f32 %v1176, %v1185
        %v1188 = vmul.f32 %v599, %v599
        %v1189 = vmul.f32 %v600, %v600
        %v1190 = vadd.f32 %v1188, %v1189
        %1191 = vadd.xlane.f32.xlu0 %v1190
        %v1192 = vpop.xlane.xlu0 %1191
        %v1193 = vrot.slane %v1192, 4
        %v1194 = vadd.f32 %v1192, %v1193
        %v1195 = vrot.slane %v1194, 2
        %v1196 = vadd.f32 %v1194, %v1195
        %v1197 = vrot.slane %v1196, 1
        %v1198 = vadd.f32 %v1196, %v1197
        %s1199 = vtos %v1198
        %v1200 = vstv %s1199
        %v1201 = vrsqrt.pop %v1200
        %v1202 = vmul.f32 %v1201, %v1200
        %v1203 = vmul.f32 %v1202, %v1201
        %v1204 = vmul.f32 0.5, %v1203
        %v1205 = vsub.f32 1.5, %v1204
        %v1206 = vmul.f32 %v1201, %v1205
        %v1207 = vmul.f32 %v1200, %v1206
        %vm1208 = vcmp.eq.f32.partialorder %v1200, inf
        %v1209 = vsel %vm1208, %v1200, %v1207
        %vm1210 = vcmp.eq.f32.partialorder %v1200, 0.0
        %v1211 = vand.u32 %v1200, 2147483648
        %v1212 = vsel %vm1210, %v1211, %v1209
        %v1213 = vmul.f32 %v1186, %v1186
        %v1214 = vmul.f32 %v1187, %v1187
        %v1215 = vadd.f32 %v1213, %v1214
        %1216 = vadd.xlane.f32.xlu0 %v1215
        %v1217 = vpop.xlane.xlu0 %1216
        %v1218 = vrot.slane %v1217, 4
        %v1219 = vadd.f32 %v1217, %v1218
        %v1220 = vrot.slane %v1219, 2
        %v1221 = vadd.f32 %v1219, %v1220
        %v1222 = vrot.slane %v1221, 1
        %v1223 = vadd.f32 %v1221, %v1222
        %s1224 = vtos %v1223
        %v1225 = vstv %s1224
        %v1226 = vrsqrt.pop %v1225
        %v1227 = vmul.f32 %v1226, %v1225
        %v1228 = vmul.f32 %v1227, %v1226
        %v1229 = vmul.f32 0.5, %v1228
        %v1230 = vsub.f32 1.5, %v1229
        %v1231 = vmul.f32 %v1226, %v1230
        %v1232 = vmul.f32 %v1225, %v1231
        %vm1233 = vcmp.eq.f32.partialorder %v1225, inf
        %v1234 = vsel %vm1233, %v1225, %v1232
        %vm1235 = vcmp.eq.f32.partialorder %v1225, 0.0
        %v1236 = vand.u32 %v1225, 2147483648
        %v1237 = vsel %vm1235, %v1236, %v1234
        %v1238 = vadd.f32 %v1237, 1e-05
        %v1239 = vrcp.pop %v1238
        %v1240 = vmul.f32 %v1212, %v1239
        %v1241 = vmul.f32 %v1186, %v1240
        %v1242 = vmul.f32 %v1187, %v1240
        %v1245 = vrot.slane %v1242, 4
        %v1246 = vsel %vm784, %v1241, %v1245
        %1248 = vst [vmem:[%s569] sm:$0xff] %v1246
        %s1249 = sand.u32 %s320, 1
        %s1250 = scalar_lea.sflag [#allocation4], %s1249
        %s1251 = sand.u32 %s320, 1
        %s1252 = smul.addr %s1251, 8
        %s1253 = scalar_lea.vmem [#allocation8], %s1252
        // Predicated region
        $region77: #{tpu_custom_call.1} parent=63 // pred_check
          %p1254 = pneg %p330
        $region78: #{tpu_custom_call.1} parent=63 // pred_check_branch
          %1256 = sbr.rel (%p1254) target = $region80
        $region79: #{tpu_custom_call.1} parent=63 // pred_region
          %1258 = vsyncadd %s1250, 0
          %s1259 = smul.addr %s31, 2
          %s1260 = smul.addr %s1259, 4
          %s1261 = scalar_lea.hbm %s11, %s1260
          %s1263 = sshll.u32 %s1253, 4
          %s1264 = int_to_ptr.vmem [resolvable:$true] %s1263
          %s1265 = sshll.u32 %s1261, 4
          %s1266 = int_to_ptr.hbm [resolvable:$true] %s1265
          %1268 = dma.vmem_to_hbm [thread:$0]  %s1264, 128, %s1266, %s1250
        $region80: #{tpu_custom_call.1} parent=63 // pred_fallthru
          _
      $region64: #{tpu_custom_call.1} parent=5 // pred_fallthru
        _
      %p1269 = scmp.le.s32.totalorder 2, %s26
      // Predicated region
      $region81: #{tpu_custom_call.1} parent=5 // pred_check
        %p1270 = pneg %p1269
      $region82: #{tpu_custom_call.1} parent=5 // pred_check_branch
        %1272 = sbr.rel (%p1270) target = $region84
      $region83: #{tpu_custom_call.1} parent=5 // pred_region
        %s1273 = ssub.s32 %s26, 2
        // Predicated region
        $region85: #{tpu_custom_call.1} parent=83 // pred_check
          %p1274 = pneg %p336
        $region86: #{tpu_custom_call.1} parent=83 // pred_check_branch
          %1276 = sbr.rel (%p1274) target = $region88
        $region87: #{tpu_custom_call.1} parent=83 // pred_region
          %s1277 = sand.u32 %s321, 1
          %s1278 = scalar_lea.sflag [#allocation4], %s1277
          %s1279 = sand.u32 %s321, 1
          %s1280 = smul.addr %s1279, 8
          %s1281 = scalar_lea.vmem [#allocation8], %s1280
          %1283 = dma.done %s1278, 128
        $region88: #{tpu_custom_call.1} parent=83 // pred_fallthru
          _
      $region84: #{tpu_custom_call.1} parent=5 // pred_fallthru
        _
    $region6: #{tpu_custom_call.1} parent=1 // loop_footer
      %s30 = sadd.s32 1, %s26
    $region7: #{tpu_custom_call.1} parent=1 // loop_footer_branch
      %25 = sbr.rel target = $region3
    $region8: #{tpu_custom_call.1} parent=1 // loop_exit
      _
    %1284 = vsyncpa [#allocation3], 1
    %s1285 = scalar_lea.sflag [#allocation3], 1
    %1286 = vsyncpa %s1285, 1
    %1287 = vsyncpa [#allocation6], 1
    %s1288 = scalar_lea.sflag [#allocation6], 1
    %1289 = vsyncpa %s1288, 1
    %1290 = vsyncpa [#allocation4], 1
    %s1291 = scalar_lea.sflag [#allocation4], 1
    %1292 = vsyncpa %s1291, 1

</llo_original>
